<compile_context>
chip_gen: v6e
topology: v6e:2x2x1
jax: 0.10.0
libtpu: 0.0.40
codegen_flags: <defaults>
</compile_context>

<pallas_src>
import functools

import jax
import jax.numpy as jnp
import numpy as np
from jax.experimental import pallas as pl
from jax.experimental.pallas import tpu as pltpu


def _expand_norm_kernel(x_ref, w_ref, gsum_ref, bcast_ref, gamma_ref, beta_ref,
                        o_ref, *, eps, p, c):
    # x_ref:     (TH, W, C)        input rows (TH spatial rows of width W)
    # w_ref:     (C, 16*C)         pre-centered expansion weight
    # gsum_ref:  (16*C, 16)        0/1 per-group sum matrix
    # bcast_ref: (16, 16*C)        0/1 per-group broadcast matrix (gsum^T)
    # gamma_ref: (1, 16*C)         LayerNorm gamma, tiled over the 16 groups
    # beta_ref:  (1, 16*C)         LayerNorm beta, tiled over the 16 groups
    # o_ref:     (TH, P, W, P*C)   output block, already pixel-shuffled layout
    th, w_sp, _ = x_ref.shape
    slab = p * c                   # 4*C lanes per p1 plane (128 when C % 32 == 0)

    xb = x_ref[...].reshape(th * w_sp, c)

    # Expansion matmul.  Weights were pre-centered, so each group of C lanes
    # of yc already has zero mean (LayerNorm mean folded into the weights).
    yc = jnp.dot(xb, w_ref[...], preferred_element_type=jnp.float32)

    # Per-group variance: sum of squares within each group of C lanes, then
    # broadcast back to all C lanes of the group.  Both are lane-dense MXU
    # matmuls with 0/1 matrices (exact even in bf16); 1/C applied in f32.
    sq = yc * yc
    gsum = jnp.dot(sq.astype(gsum_ref.dtype), gsum_ref[...],
                   preferred_element_type=jnp.float32)                 # (M, 16)
    var = jnp.dot(gsum.astype(bcast_ref.dtype), bcast_ref[...],
                  preferred_element_type=jnp.float32) * (1.0 / c)      # (M, 16C)

    out = yc * jax.lax.rsqrt(var + eps)
    out = out * gamma_ref[...] + beta_ref[...]

    # Scatter the (p1, p2, c) lane layout into the output block: lane slab p1
    # (4*C lanes, 128-aligned when C % 32 == 0) goes to output plane p1.
    out = out.reshape(th, w_sp, p * slab).astype(o_ref.dtype)
    for p1 in range(p):
        o_ref[:, p1, :, :] = out[:, :, p1 * slab:(p1 + 1) * slab]


def _pick_tile_h(num_rows, w_sp, target_rows=512):
    """Largest divisor th of num_rows with th*w_sp <= target_rows and grid >= 2."""
    best = 1
    for th in range(1, num_rows + 1):
        if num_rows % th:
            continue
        if th * w_sp > target_rows:
            continue
        if num_rows >= 2 and num_rows // th < 2:
            continue
        best = th
    return best


def final_patch_expand_x4(x, w, gamma, beta, *, dim_scale=4, eps=1e-5,
                          tile_h=None, compute_dtype=None, out_dtype=None):
    """x: (B, H, W, C); w: (C, 16*C) (nn.Linear weight transposed);
    gamma/beta: (C,).  Returns (B, 4H, 4W, C)."""
    B, H, W, C = x.shape
    P = dim_scale
    G = P * P
    assert w.shape == (C, G * C)
    out_dtype = x.dtype if out_dtype is None else out_dtype
    compute_dtype = x.dtype if compute_dtype is None else compute_dtype

    BH = B * H
    if tile_h is None:
        tile_h = _pick_tile_h(BH, W)
    assert BH % tile_h == 0, "tile_h must divide B*H"

    # --- constants (numpy-built, baked when the wrapper is jitted) -----------
    gidx = np.arange(G * C) // C
    gsum_np = (gidx[:, None] == np.arange(G)[None, :]).astype(np.float32)  # (16C, 16)
    gsum = jnp.asarray(gsum_np).astype(compute_dtype)
    bcast = jnp.asarray(gsum_np.T).astype(compute_dtype)                   # (16, 16C)

    gamma_t = jnp.tile(gamma.astype(jnp.float32), G).reshape(1, G * C)
    beta_t = jnp.tile(beta.astype(jnp.float32), G).reshape(1, G * C)

    # Fold the LayerNorm mean subtraction into the weights (exact: both linear).
    w3 = w.astype(jnp.float32).reshape(C, G, C)
    w_centered = (w3 - w3.mean(-1, keepdims=True)).reshape(C, G * C)
    w_centered = w_centered.astype(compute_dtype)

    x_rows = x.reshape(BH, W, C).astype(compute_dtype)

    kernel = functools.partial(_expand_norm_kernel, eps=eps, p=P, c=C)

    y = pl.pallas_call(
        kernel,
        out_shape=jax.ShapeDtypeStruct((BH, P, W, P * C), out_dtype),
        grid_spec=pltpu.PrefetchScalarGridSpec(
            num_scalar_prefetch=0,
            grid=(BH // tile_h,),
            in_specs=[
                pl.BlockSpec((tile_h, W, C), lambda i: (i, 0, 0)),
                pl.BlockSpec((C, G * C), lambda i: (0, 0)),
                pl.BlockSpec((G * C, G), lambda i: (0, 0)),
                pl.BlockSpec((G, G * C), lambda i: (0, 0)),
                pl.BlockSpec((1, G * C), lambda i: (0, 0)),
                pl.BlockSpec((1, G * C), lambda i: (0, 0)),
            ],
            out_specs=pl.BlockSpec((tile_h, P, W, P * C),
                                   lambda i: (i, 0, 0, 0)),
        ),
        compiler_params=pltpu.CompilerParams(
            dimension_semantics=("parallel",)),
    )(x_rows, w_centered, gsum, bcast, gamma_t, beta_t)

    # (BH, P, W, P*C) is row-major identical to (B, H*P, W*P, C): free reshape.
    return y.reshape(B, H * P, W * P, C)


def _reference(x, w, gamma, beta, *, dim_scale=4, eps=1e-5):
    B, H, W, C = x.shape
    P = dim_scale
    y = jnp.einsum("bhwc,cd->bhwd", x, w)                # Linear, no bias
    y = y.reshape(B, H, W, P, P, C)
    mean = y.mean(-1, keepdims=True)
    var = ((y - mean) ** 2).mean(-1, keepdims=True)
    y = (y - mean) / jnp.sqrt(var + eps) * gamma + beta  # LayerNorm(C)
    y = jnp.transpose(y, (0, 1, 3, 2, 4, 5))
    return y.reshape(B, H * P, W * P, C)


if __name__ == "__main__":
    key = jax.random.PRNGKey(0)
    kx, kw, kg, kb = jax.random.split(key, 4)

    dim = 32
    B, H, W = 2, 8, 8

    x = jax.random.normal(kx, (B, H, W, dim), dtype=jnp.float32)
    # nn.Linear(dim, 16*dim, bias=False): weight is (16*dim, dim); we pass W^T.
    w = (jax.random.normal(kw, (dim, 16 * dim), dtype=jnp.float32)
         / jnp.sqrt(jnp.float32(dim)))
    gamma = 1.0 + 0.1 * jax.random.normal(kg, (dim,), dtype=jnp.float32)
    beta = 0.1 * jax.random.normal(kb, (dim,), dtype=jnp.float32)

    expected = _reference(x, w, gamma, beta)

    # Exact-math path (f32 MXU operands): tight correctness check.
    fwd_f32 = jax.jit(functools.partial(final_patch_expand_x4,
                                        compute_dtype=jnp.float32))
    out = jax.block_until_ready(fwd_f32(x, w, gamma, beta))
    assert out.shape == (B, 4 * H, 4 * W, dim)
    np.testing.assert_allclose(np.asarray(out), np.asarray(expected),
                               atol=1e-4, rtol=1e-4)

    # bf16-MXU perf path (v6e/v7x): sanity check at bf16-level tolerance.
    fwd_bf16 = jax.jit(functools.partial(final_patch_expand_x4,
                                         compute_dtype=jnp.bfloat16))
    out_bf16 = jax.block_until_ready(fwd_bf16(x, w, gamma, beta))
    np.testing.assert_allclose(np.asarray(out_bf16), np.asarray(expected),
                               atol=1e-1, rtol=1e-1)

    print("KERNEL_OK")
</pallas_src>

<mosaic_0001>
module attributes {stable_mosaic.version = 11 : i64} {
  func.func @_expand_norm_kernel(%arg0: i32, %arg1: memref<8x8x32xf32, #tpu.memory_space<vmem>>, %arg2: memref<32x512xf32, #tpu.memory_space<vmem>>, %arg3: memref<512x16xf32, #tpu.memory_space<vmem>>, %arg4: memref<16x512xf32, #tpu.memory_space<vmem>>, %arg5: memref<1x512xf32, #tpu.memory_space<vmem>>, %arg6: memref<1x512xf32, #tpu.memory_space<vmem>>, %arg7: memref<8x4x8x128xf32, #tpu.memory_space<vmem>>) attributes {dimension_semantics = [#tpu.dimension_semantics<parallel>], iteration_bounds = array<i64: 2>, scalar_prefetch = 0 : i64, scratch_operands = 0 : i64, tpu.core_type = #tpu.core_type<tc>, window_params = [{transform_indices = @transform_0, window_bounds = array<i64: 8, 8, 32>}, {pipeline_mode = #tpu.pipeline_mode<synchronous>, transform_indices = @transform_1, window_bounds = array<i64: 32, 512>}, {pipeline_mode = #tpu.pipeline_mode<synchronous>, transform_indices = @transform_2, window_bounds = array<i64: 512, 16>}, {pipeline_mode = #tpu.pipeline_mode<synchronous>, transform_indices = @transform_3, window_bounds = array<i64: 16, 512>}, {pipeline_mode = #tpu.pipeline_mode<synchronous>, transform_indices = @transform_4, window_bounds = array<i64: 1, 512>}, {pipeline_mode = #tpu.pipeline_mode<synchronous>, transform_indices = @transform_5, window_bounds = array<i64: 1, 512>}, {transform_indices = @transform_6, window_bounds = array<i64: 8, 4, 8, 128>}]} {
    %c0 = arith.constant 0 : index
    %c0_0 = arith.constant 0 : index
    %c0_1 = arith.constant 0 : index
    %0 = vector.load %arg1[%c0, %c0_0, %c0_1] : memref<8x8x32xf32, #tpu.memory_space<vmem>>, vector<8x8x32xf32>
    %1 = vector.shape_cast %0 : vector<8x8x32xf32> to vector<64x32xf32>
    %c0_2 = arith.constant 0 : index
    %c0_3 = arith.constant 0 : index
    %2 = vector.load %arg2[%c0_2, %c0_3] : memref<32x512xf32, #tpu.memory_space<vmem>>, vector<32x512xf32>
    %cst = arith.constant dense<0.000000e+00> : vector<64x512xf32>
    %3 = tpu.matmul %1, %2, %cst {dimension_numbers = #tpu.dot_dimension_numbers<[1], [0], [0], [1], [0, 0, 1, 1], [], []>} : vector<64x32xf32>, vector<32x512xf32>, vector<64x512xf32> -> vector<64x512xf32>
    %4 = arith.mulf %3, %3 : vector<64x512xf32>
    %c0_4 = arith.constant 0 : index
    %c0_5 = arith.constant 0 : index
    %5 = vector.load %arg3[%c0_4, %c0_5] : memref<512x16xf32, #tpu.memory_space<vmem>>, vector<512x16xf32>
    %cst_6 = arith.constant dense<0.000000e+00> : vector<64x16xf32>
    %6 = tpu.matmul %4, %5, %cst_6 {dimension_numbers = #tpu.dot_dimension_numbers<[1], [0], [0], [1], [0, 0, 1, 1], [], []>} : vector<64x512xf32>, vector<512x16xf32>, vector<64x16xf32> -> vector<64x16xf32>
    %c0_7 = arith.constant 0 : index
    %c0_8 = arith.constant 0 : index
    %7 = vector.load %arg4[%c0_7, %c0_8] : memref<16x512xf32, #tpu.memory_space<vmem>>, vector<16x512xf32>
    %cst_9 = arith.constant dense<0.000000e+00> : vector<64x512xf32>
    %8 = tpu.matmul %6, %7, %cst_9 {dimension_numbers = #tpu.dot_dimension_numbers<[1], [0], [0], [1], [0, 0, 1, 1], [], []>} : vector<64x16xf32>, vector<16x512xf32>, vector<64x512xf32> -> vector<64x512xf32>
    %cst_10 = arith.constant 3.125000e-02 : f32
    %9 = vector.broadcast %cst_10 : f32 to vector<64x512xf32>
    %10 = arith.mulf %8, %9 : vector<64x512xf32>
    %cst_11 = arith.constant 9.99999974E-6 : f32
    %11 = vector.broadcast %cst_11 : f32 to vector<64x512xf32>
    %12 = arith.addf %10, %11 : vector<64x512xf32>
    %13 = math.rsqrt %12 : vector<64x512xf32>
    %14 = arith.mulf %3, %13 : vector<64x512xf32>
    %c0_12 = arith.constant 0 : index
    %c0_13 = arith.constant 0 : index
    %15 = vector.load %arg5[%c0_12, %c0_13] : memref<1x512xf32, #tpu.memory_space<vmem>>, vector<1x512xf32>
    %16 = vector.broadcast %15 : vector<1x512xf32> to vector<64x512xf32>
    %17 = arith.mulf %14, %16 : vector<64x512xf32>
    %c0_14 = arith.constant 0 : index
    %c0_15 = arith.constant 0 : index
    %18 = vector.load %arg6[%c0_14, %c0_15] : memref<1x512xf32, #tpu.memory_space<vmem>>, vector<1x512xf32>
    %19 = vector.broadcast %18 : vector<1x512xf32> to vector<64x512xf32>
    %20 = arith.addf %17, %19 : vector<64x512xf32>
    %21 = vector.shape_cast %20 : vector<64x512xf32> to vector<8x8x512xf32>
    %22 = vector.extract_strided_slice %21 {offsets = [0, 0, 0], sizes = [8, 8, 128], strides = [1, 1, 1]} : vector<8x8x512xf32> to vector<8x8x128xf32>
    %c0_16 = arith.constant 0 : index
    %c0_17 = arith.constant 0 : index
    %c0_18 = arith.constant 0 : index
    %c0_19 = arith.constant 0 : index
    %23 = vector.load %arg7[%c0_16, %c0_17, %c0_18, %c0_19] : memref<8x4x8x128xf32, #tpu.memory_space<vmem>>, vector<8x1x8x128xf32>
    %24 = vector.shape_cast %23 : vector<8x1x8x128xf32> to vector<8x8x128xf32>
    %25 = vector.shape_cast %22 : vector<8x8x128xf32> to vector<8x1x8x128xf32>
    tpu.vector_store %arg7[%c0_16, %c0_17, %c0_18, %c0_19], %25 {strides = array<i32>} : memref<8x4x8x128xf32, #tpu.memory_space<vmem>>, vector<8x1x8x128xf32>,
    %26 = vector.extract_strided_slice %21 {offsets = [0, 0, 128], sizes = [8, 8, 128], strides = [1, 1, 1]} : vector<8x8x512xf32> to vector<8x8x128xf32>
    %c0_20 = arith.constant 0 : index
    %c1 = arith.constant 1 : index
    %c0_21 = arith.constant 0 : index
    %c0_22 = arith.constant 0 : index
    %27 = vector.load %arg7[%c0_20, %c1, %c0_21, %c0_22] : memref<8x4x8x128xf32, #tpu.memory_space<vmem>>, vector<8x1x8x128xf32>
    %28 = vector.shape_cast %27 : vector<8x1x8x128xf32> to vector<8x8x128xf32>
    %29 = vector.shape_cast %26 : vector<8x8x128xf32> to vector<8x1x8x128xf32>
    tpu.vector_store %arg7[%c0_20, %c1, %c0_21, %c0_22], %29 {strides = array<i32>} : memref<8x4x8x128xf32, #tpu.memory_space<vmem>>, vector<8x1x8x128xf32>,
    %30 = vector.extract_strided_slice %21 {offsets = [0, 0, 256], sizes = [8, 8, 128], strides = [1, 1, 1]} : vector<8x8x512xf32> to vector<8x8x128xf32>
    %c0_23 = arith.constant 0 : index
    %c2 = arith.constant 2 : index
    %c0_24 = arith.constant 0 : index
    %c0_25 = arith.constant 0 : index
    %31 = vector.load %arg7[%c0_23, %c2, %c0_24, %c0_25] : memref<8x4x8x128xf32, #tpu.memory_space<vmem>>, vector<8x1x8x128xf32>
    %32 = vector.shape_cast %31 : vector<8x1x8x128xf32> to vector<8x8x128xf32>
    %33 = vector.shape_cast %30 : vector<8x8x128xf32> to vector<8x1x8x128xf32>
    tpu.vector_store %arg7[%c0_23, %c2, %c0_24, %c0_25], %33 {strides = array<i32>} : memref<8x4x8x128xf32, #tpu.memory_space<vmem>>, vector<8x1x8x128xf32>,
    %34 = vector.extract_strided_slice %21 {offsets = [0, 0, 384], sizes = [8, 8, 128], strides = [1, 1, 1]} : vector<8x8x512xf32> to vector<8x8x128xf32>
    %c0_26 = arith.constant 0 : index
    %c3 = arith.constant 3 : index
    %c0_27 = arith.constant 0 : index
    %c0_28 = arith.constant 0 : index
    %35 = vector.load %arg7[%c0_26, %c3, %c0_27, %c0_28] : memref<8x4x8x128xf32, #tpu.memory_space<vmem>>, vector<8x1x8x128xf32>
    %36 = vector.shape_cast %35 : vector<8x1x8x128xf32> to vector<8x8x128xf32>
    %37 = vector.shape_cast %34 : vector<8x8x128xf32> to vector<8x1x8x128xf32>
    tpu.vector_store %arg7[%c0_26, %c3, %c0_27, %c0_28], %37 {strides = array<i32>} : memref<8x4x8x128xf32, #tpu.memory_space<vmem>>, vector<8x1x8x128xf32>,
    return
  }
  func.func @transform_0(%arg0: i32) -> (i32, i32, i32) {
    %c0_i32 = arith.constant 0 : i32
    %c0_i32_0 = arith.constant 0 : i32
    %c0_i32_1 = arith.constant 0 : i32
    return %arg0, %c0_i32, %c0_i32_0 : i32, i32, i32
  }
  func.func @transform_1(%arg0: i32) -> (i32, i32) {
    %c0_i32 = arith.constant 0 : i32
    %c0_i32_0 = arith.constant 0 : i32
    %c0_i32_1 = arith.constant 0 : i32
    return %c0_i32, %c0_i32_0 : i32, i32
  }
  func.func @transform_2(%arg0: i32) -> (i32, i32) {
    %c0_i32 = arith.constant 0 : i32
    %c0_i32_0 = arith.constant 0 : i32
    %c0_i32_1 = arith.constant 0 : i32
    return %c0_i32, %c0_i32_0 : i32, i32
  }
  func.func @transform_3(%arg0: i32) -> (i32, i32) {
    %c0_i32 = arith.constant 0 : i32
    %c0_i32_0 = arith.constant 0 : i32
    %c0_i32_1 = arith.constant 0 : i32
    return %c0_i32, %c0_i32_0 : i32, i32
  }
  func.func @transform_4(%arg0: i32) -> (i32, i32) {
    %c0_i32 = arith.constant 0 : i32
    %c0_i32_0 = arith.constant 0 : i32
    %c0_i32_1 = arith.constant 0 : i32
    return %c0_i32, %c0_i32_0 : i32, i32
  }
  func.func @transform_5(%arg0: i32) -> (i32, i32) {
    %c0_i32 = arith.constant 0 : i32
    %c0_i32_0 = arith.constant 0 : i32
    %c0_i32_1 = arith.constant 0 : i32
    return %c0_i32, %c0_i32_0 : i32, i32
  }
  func.func @transform_6(%arg0: i32) -> (i32, i32, i32, i32) {
    %c0_i32 = arith.constant 0 : i32
    %c0_i32_0 = arith.constant 0 : i32
    %c0_i32_1 = arith.constant 0 : i32
    %c0_i32_2 = arith.constant 0 : i32
    return %arg0, %c0_i32, %c0_i32_0, %c0_i32_1 : i32, i32, i32, i32
  }
}

</mosaic_0001>

<llo_original>
// kernel: tile.13
$region0: #{tile.13}
  #allocation0 [shape = 's32[1]{0}', space=sflag, size = 0x4, scoped, tag = 'scoped memory for tile.13']
  %s0 = inlined_call_operand.vmem [shape: f32[32], index: 0, kind: input, shape index: {}]
  %s1 = inlined_call_operand.vmem [shape: f32[16,32], index: 1, kind: output, shape index: {}]
  // Predicated region
  $region2: #{tile.13} parent=0 // pred_check
    _
  $region3: #{tile.13} parent=0 // pred_check_branch
    %3 = sbr.rel (0) target = $region5
  $region4: #{tile.13} parent=0 // pred_region
    _
  $region5: #{tile.13} parent=0 // pred_fallthru
    _
  %v4 = vld [vmem:[%s0] ss:$0 sm:$0xff]
  %5 = vst [vmem:[%s1] sm:$0xff] %v4
  %s6 = scalar_lea.vmem %s1, 8
  %7 = vst [vmem:[%s6] sm:$0xff] %v4

// kernel: tile.14
$region0: #{tile.14}
  %s0 = inlined_call_operand.vmem [shape: f32[16,32], index: 0, kind: input, shape index: {}]
  %s1 = inlined_call_operand.vmem [shape: f32[1,512], index: 1, kind: output, shape index: {}]
  $region1: #{tile.14} parent=0
    #allocation0 [shape = 'u8[16384]{0}', space=vmem, size = 0x4000, scoped, tag = 'scoped mem for output reshape']
    %v2 = vld [vmem:[%s0] ss:$4 sm:$0xf]
    %vm3 = vcmask 261120
    %4 = vst.msk [vmem:[#allocation0] ss:$8 sm:$0xf] %vm3, %v2
    %s5 = scalar_lea.vmem %s0, 3
    %v6 = vld [vmem:[%s5] ss:$4 sm:$0xf]
    %7 = vrot.lane.b32.xlu0 %v6, 96
    %v8 = vpop.permute.xlu0 %7
    %vm9 = vcmask 1048320
    %10 = vst.msk [vmem:[#allocation0] ss:$8 sm:$0xf] %vm9, %v8
    %s11 = scalar_lea.vmem %s0, 2
    %v12 = vld [vmem:[%s11] ss:$4 sm:$0xf]
    %13 = vrot.lane.b32.xlu0 %v12, 64
    %v14 = vpop.permute.xlu0 %13
    %vm15 = vcmask 785920
    %16 = vst.msk [vmem:[#allocation0] ss:$8 sm:$0xf] %vm15, %v14
    %s17 = scalar_lea.vmem %s0, 1
    %v18 = vld [vmem:[%s17] ss:$4 sm:$0xf]
    %19 = vrot.lane.b32.xlu0 %v18, 32
    %v20 = vpop.permute.xlu0 %19
    %vm21 = vcmask 523520
    %22 = vst.msk [vmem:[#allocation0] ss:$8 sm:$0xf] %vm21, %v20
    %s24 = sshll.u32 1, 1
    %s25 = ssub.s32 %s24, 1
    %v27 = vld [vmem:[#allocation0] sm:%s25]
    %s28 = sshll.u32 1, 1
    %s29 = ssub.s32 %s28, 1
    %30 = vst [vmem:[%s1] sm:%s29] %v27
    %s31 = scalar_lea.vmem [#allocation0], 8
    %v32 = vld [vmem:[%s31] sm:%s25]
    %s33 = sshll.u32 1, 1
    %s34 = ssub.s32 %s33, 1
    %s35 = scalar_lea.vmem %s1, 1
    %36 = vst [vmem:[%s35] sm:%s34] %v32
    %s37 = scalar_lea.vmem [#allocation0], 16
    %v38 = vld [vmem:[%s37] sm:%s25]
    %s39 = sshll.u32 1, 1
    %s40 = ssub.s32 %s39, 1
    %s41 = smul.addr 1, 2
    %s42 = scalar_lea.vmem %s1, %s41
    %43 = vst [vmem:[%s42] sm:%s40] %v38
    %s44 = scalar_lea.vmem [#allocation0], 24
    %v45 = vld [vmem:[%s44] sm:%s25]
    %s46 = sshll.u32 1, 1
    %s47 = ssub.s32 %s46, 1
    %s48 = smul.addr 1, 3
    %s49 = scalar_lea.vmem %s1, %s48
    %50 = vst [vmem:[%s49] sm:%s47] %v45

// kernel: sub.0
$region0: #{sub.0}
  #allocation0 [shape = 's32[1]{0}', space=sflag, size = 0x4, scoped, tag = 'scoped memory for sub.0']
  %s0 = inlined_call_operand.vmem [shape: f32[32,512], index: 0, kind: input, shape index: {}]
  %s1 = inlined_call_operand.vmem [shape: f32[32,512], index: 1, kind: input, shape index: {}]
  %s2 = inlined_call_operand.vmem [shape: f32[32,512], index: 2, kind: output, shape index: {}]
  %v3 = vld [vmem:[%s0] sm:$0xff]
  %v4 = vld [vmem:[%s1] sm:$0xff]
  %5 = xla_tuple %v3, %v4
  %6 = xla_tuple %5
  %v7 = vsub.f32 %v3, %v4
  %8 = xla_tuple %v7
  %9 = vst [vmem:[%s2] sm:$0xff] %v7
  %s10 = scalar_lea.vmem %s0, 32
  %v11 = vld [vmem:[%s10] sm:$0xff]
  %s12 = scalar_lea.vmem %s1, 32
  %v13 = vld [vmem:[%s12] sm:$0xff]
  %14 = xla_tuple %v11, %v13
  %15 = xla_tuple %14
  %v16 = vsub.f32 %v11, %v13
  %17 = xla_tuple %v16
  %s18 = scalar_lea.vmem %s2, 32
  %19 = vst [vmem:[%s18] sm:$0xff] %v16
  %s20 = scalar_lea.vmem %s0, 64
  %v21 = vld [vmem:[%s20] sm:$0xff]
  %s22 = scalar_lea.vmem %s1, 64
  %v23 = vld [vmem:[%s22] sm:$0xff]
  %24 = xla_tuple %v21, %v23
  %25 = xla_tuple %24
  %v26 = vsub.f32 %v21, %v23
  %27 = xla_tuple %v26
  %s28 = scalar_lea.vmem %s2, 64
  %29 = vst [vmem:[%s28] sm:$0xff] %v26
  %s30 = scalar_lea.vmem %s0, 96
  %v31 = vld [vmem:[%s30] sm:$0xff]
  %s32 = scalar_lea.vmem %s1, 96
  %v33 = vld [vmem:[%s32] sm:$0xff]
  %34 = xla_tuple %v31, %v33
  %35 = xla_tuple %34
  %v36 = vsub.f32 %v31, %v33
  %37 = xla_tuple %v36
  %s38 = scalar_lea.vmem %s2, 96
  %39 = vst [vmem:[%s38] sm:$0xff] %v36
  %s40 = scalar_lea.vmem %s0, 8
  %v41 = vld [vmem:[%s40] sm:$0xff]
  %s42 = scalar_lea.vmem %s1, 8
  %v43 = vld [vmem:[%s42] sm:$0xff]
  %44 = xla_tuple %v41, %v43
  %45 = xla_tuple %44
  %v46 = vsub.f32 %v41, %v43
  %47 = xla_tuple %v46
  %s48 = scalar_lea.vmem %s2, 8
  %49 = vst [vmem:[%s48] sm:$0xff] %v46
  %s50 = scalar_lea.vmem %s0, 40
  %v51 = vld [vmem:[%s50] sm:$0xff]
  %s52 = scalar_lea.vmem %s1, 40
  %v53 = vld [vmem:[%s52] sm:$0xff]
  %54 = xla_tuple %v51, %v53
  %55 = xla_tuple %54
  %v56 = vsub.f32 %v51, %v53
  %57 = xla_tuple %v56
  %s58 = scalar_lea.vmem %s2, 40
  %59 = vst [vmem:[%s58] sm:$0xff] %v56
  %s60 = scalar_lea.vmem %s0, 72
  %v61 = vld [vmem:[%s60] sm:$0xff]
  %s62 = scalar_lea.vmem %s1, 72
  %v63 = vld [vmem:[%s62] sm:$0xff]
  %64 = xla_tuple %v61, %v63
  %65 = xla_tuple %64
  %v66 = vsub.f32 %v61, %v63
  %67 = xla_tuple %v66
  %s68 = scalar_lea.vmem %s2, 72
  %69 = vst [vmem:[%s68] sm:$0xff] %v66
  %s70 = scalar_lea.vmem %s0, 104
  %v71 = vld [vmem:[%s70] sm:$0xff]
  %s72 = scalar_lea.vmem %s1, 104
  %v73 = vld [vmem:[%s72] sm:$0xff]
  %74 = xla_tuple %v71, %v73
  %75 = xla_tuple %74
  %v76 = vsub.f32 %v71, %v73
  %77 = xla_tuple %v76
  %s78 = scalar_lea.vmem %s2, 104
  %79 = vst [vmem:[%s78] sm:$0xff] %v76
  %s80 = scalar_lea.vmem %s0, 16
  %v81 = vld [vmem:[%s80] sm:$0xff]
  %s82 = scalar_lea.vmem %s1, 16
  %v83 = vld [vmem:[%s82] sm:$0xff]
  %84 = xla_tuple %v81, %v83
  %85 = xla_tuple %84
  %v86 = vsub.f32 %v81, %v83
  %87 = xla_tuple %v86
  %s88 = scalar_lea.vmem %s2, 16
  %89 = vst [vmem:[%s88] sm:$0xff] %v86
  %s90 = scalar_lea.vmem %s0, 48
  %v91 = vld [vmem:[%s90] sm:$0xff]
  %s92 = scalar_lea.vmem %s1, 48
  %v93 = vld [vmem:[%s92] sm:$0xff]
  %94 = xla_tuple %v91, %v93
  %95 = xla_tuple %94
  %v96 = vsub.f32 %v91, %v93
  %97 = xla_tuple %v96
  %s98 = scalar_lea.vmem %s2, 48
  %99 = vst [vmem:[%s98] sm:$0xff] %v96
  %s100 = scalar_lea.vmem %s0, 80
  %v101 = vld [vmem:[%s100] sm:$0xff]
  %s102 = scalar_lea.vmem %s1, 80
  %v103 = vld [vmem:[%s102] sm:$0xff]
  %104 = xla_tuple %v101, %v103
  %105 = xla_tuple %104
  %v106 = vsub.f32 %v101, %v103
  %107 = xla_tuple %v106
  %s108 = scalar_lea.vmem %s2, 80
  %109 = vst [vmem:[%s108] sm:$0xff] %v106
  %s110 = scalar_lea.vmem %s0, 112
  %v111 = vld [vmem:[%s110] sm:$0xff]
  %s112 = scalar_lea.vmem %s1, 112
  %v113 = vld [vmem:[%s112] sm:$0xff]
  %114 = xla_tuple %v111, %v113
  %115 = xla_tuple %114
  %v116 = vsub.f32 %v111, %v113
  %117 = xla_tuple %v116
  %s118 = scalar_lea.vmem %s2, 112
  %119 = vst [vmem:[%s118] sm:$0xff] %v116
  %s120 = scalar_lea.vmem %s0, 24
  %v121 = vld [vmem:[%s120] sm:$0xff]
  %s122 = scalar_lea.vmem %s1, 24
  %v123 = vld [vmem:[%s122] sm:$0xff]
  %124 = xla_tuple %v121, %v123
  %125 = xla_tuple %124
  %v126 = vsub.f32 %v121, %v123
  %127 = xla_tuple %v126
  %s128 = scalar_lea.vmem %s2, 24
  %129 = vst [vmem:[%s128] sm:$0xff] %v126
  %s130 = scalar_lea.vmem %s0, 56
  %v131 = vld [vmem:[%s130] sm:$0xff]
  %s132 = scalar_lea.vmem %s1, 56
  %v133 = vld [vmem:[%s132] sm:$0xff]
  %134 = xla_tuple %v131, %v133
  %135 = xla_tuple %134
  %v136 = vsub.f32 %v131, %v133
  %137 = xla_tuple %v136
  %s138 = scalar_lea.vmem %s2, 56
  %139 = vst [vmem:[%s138] sm:$0xff] %v136
  %s140 = scalar_lea.vmem %s0, 88
  %v141 = vld [vmem:[%s140] sm:$0xff]
  %s142 = scalar_lea.vmem %s1, 88
  %v143 = vld [vmem:[%s142] sm:$0xff]
  %144 = xla_tuple %v141, %v143
  %145 = xla_tuple %144
  %v146 = vsub.f32 %v141, %v143
  %147 = xla_tuple %v146
  %s148 = scalar_lea.vmem %s2, 88
  %149 = vst [vmem:[%s148] sm:$0xff] %v146
  %s150 = scalar_lea.vmem %s0, 120
  %v151 = vld [vmem:[%s150] sm:$0xff]
  %s152 = scalar_lea.vmem %s1, 120
  %v153 = vld [vmem:[%s152] sm:$0xff]
  %154 = xla_tuple %v151, %v153
  %155 = xla_tuple %154
  %v156 = vsub.f32 %v151, %v153
  %157 = xla_tuple %v156
  %s158 = scalar_lea.vmem %s2, 120
  %159 = vst [vmem:[%s158] sm:$0xff] %v156

// kernel: final_patch_expand_x4.1
$region0: #{final_patch_expand_x4.1}
  #allocation0 [shape = 'u32[]', space=smem, size = 0x4, offset = 0x4, fixed_abs, tag = 'smem constant byte address 0x4 - core index']
  #allocation1 [shape = 'u32[144,128]{1,0:T(1,128)}', space=vmem, size = 0x12000, scoped, tag = 'internal scratch']
  %s0 = inlined_call_operand.vmem [shape: f32[16,8,32], index: 0, kind: input, shape index: {}]
  %s1 = inlined_call_operand.vmem [shape: f32[32,512], index: 1, kind: input, shape index: {}]
  %s2 = inlined_call_operand.vmem [shape: f32[512,16], index: 2, kind: input, shape index: {}]
  %s3 = inlined_call_operand.vmem [shape: f32[16,512], index: 3, kind: input, shape index: {}]
  %s4 = inlined_call_operand.vmem [shape: f32[1,512], index: 4, kind: input, shape index: {}]
  %s5 = inlined_call_operand.vmem [shape: f32[1,512], index: 5, kind: input, shape index: {}]
  %s6 = inlined_call_operand.vmem [shape: f32[16,4,8,128], index: 6, kind: output, shape index: {}]
  %s7 = sld [smem:[#allocation0]]
  $region57: #{final_patch_expand_x4.1} parent=0
    _
  %s9 = ssub.s32 1, %s7
  %s10 = scalar_select 0, %s9, %s7
  loop: start=0, step=1, limit=4
  $region2: #{final_patch_expand_x4.1} parent=0 // loop_pre_header
    _
  $region3: #{final_patch_expand_x4.1} parent=0 // loop_header
    %s12 = sphi 0, %s16
    %p13 = scmp.ge.s32.totalorder %s12, 4
    %s22 = sphi 0, %s24
    %s25 = sphi 0, %s22
    %s26 = sphi 0, %s25
    %s42 = sphi 0, %s26
    %s46 = sphi 0, %s46
    %s48 = sphi 0, %s46
    %s49 = sphi 0, %s48
    %s63 = sphi 0, %s49
    %s67 = sphi 0, %s67
    %s69 = sphi 0, %s67
    %s70 = sphi 0, %s69
    %s84 = sphi 0, %s70
    %s88 = sphi 0, %s88
    %s90 = sphi 0, %s88
    %s91 = sphi 0, %s90
    %s105 = sphi 0, %s91
    %s109 = sphi 0, %s109
    %s111 = sphi 0, %s109
    %s112 = sphi 0, %s111
    %s126 = sphi 0, %s112
    %s130 = sphi 0, %s130
    %s132 = sphi 0, %s130
    %s133 = sphi 0, %s132
    %s147 = sphi 0, %s133
    %s153 = sphi 0, %s155
    %s156 = sphi 0, %s153
    %s157 = sphi 0, %s156
    %s173 = sphi 0, %s157
  $region4: #{final_patch_expand_x4.1} parent=0 // loop_header_branch
    %15 = sbr.rel (%p13) target = $region8
  $region5: #{final_patch_expand_x4.1} parent=0 // loop_body
    %s17 = ssub.s32 %s12, 1
    %s18 = ssub.s32 %s12, 2
    %s19 = sadd.s32 %s12, 1
    %s20 = ssub.s32 %s12, %s19
    %p21 = scmp.eq.s32.totalorder %s20, 0
    %s23 = sadd.s32 %s22, 1
    %s24 = scalar_select %p21, %s22, %s23
    %p27 = pneg %p21
    %p28 = scmp.eq.s32.totalorder %s12, 1
    %p29 = por %p27, %p28
    %p30 = scmp.ne.s32.totalorder %s22, %s25
    %p31 = scmp.eq.s32.totalorder %s12, 0
    %p32 = por %p30, %p31
    %p33 = scmp.ne.s32.totalorder %s22, %s25
    %p34 = scmp.eq.s32.totalorder %s17, 1
    %p35 = por %p33, %p34
    %p36 = scmp.ne.s32.totalorder %s25, %s26
    %p37 = scmp.eq.s32.totalorder %s17, 0
    %p38 = por %p36, %p37
    %p39 = scmp.ne.s32.totalorder %s25, %s26
    %p40 = scmp.eq.s32.totalorder %s18, 1
    %p41 = por %p39, %p40
    %p43 = scmp.ne.s32.totalorder %s26, %s42
    %p44 = scmp.eq.s32.totalorder %s18, 0
    %p45 = por %p43, %p44
    %s47 = sadd.s32 %s46, 1
    %p50 = scmp.eq.s32.totalorder %s12, 1
    %p51 = scmp.ne.s32.totalorder %s46, %s48
    %p52 = scmp.eq.s32.totalorder %s12, 0
    %p53 = por %p51, %p52
    %p54 = scmp.ne.s32.totalorder %s46, %s48
    %p55 = scmp.eq.s32.totalorder %s17, 1
    %p56 = por %p54, %p55
    %p57 = scmp.ne.s32.totalorder %s48, %s49
    %p58 = scmp.eq.s32.totalorder %s17, 0
    %p59 = por %p57, %p58
    %p60 = scmp.ne.s32.totalorder %s48, %s49
    %p61 = scmp.eq.s32.totalorder %s18, 1
    %p62 = por %p60, %p61
    %p64 = scmp.ne.s32.totalorder %s49, %s63
    %p65 = scmp.eq.s32.totalorder %s18, 0
    %p66 = por %p64, %p65
    %s68 = sadd.s32 %s67, 1
    %p71 = scmp.eq.s32.totalorder %s12, 1
    %p72 = scmp.ne.s32.totalorder %s67, %s69
    %p73 = scmp.eq.s32.totalorder %s12, 0
    %p74 = por %p72, %p73
    %p75 = scmp.ne.s32.totalorder %s67, %s69
    %p76 = scmp.eq.s32.totalorder %s17, 1
    %p77 = por %p75, %p76
    %p78 = scmp.ne.s32.totalorder %s69, %s70
    %p79 = scmp.eq.s32.totalorder %s17, 0
    %p80 = por %p78, %p79
    %p81 = scmp.ne.s32.totalorder %s69, %s70
    %p82 = scmp.eq.s32.totalorder %s18, 1
    %p83 = por %p81, %p82
    %p85 = scmp.ne.s32.totalorder %s70, %s84
    %p86 = scmp.eq.s32.totalorder %s18, 0
    %p87 = por %p85, %p86
    %s89 = sadd.s32 %s88, 1
    %p92 = scmp.eq.s32.totalorder %s12, 1
    %p93 = scmp.ne.s32.totalorder %s88, %s90
    %p94 = scmp.eq.s32.totalorder %s12, 0
    %p95 = por %p93, %p94
    %p96 = scmp.ne.s32.totalorder %s88, %s90
    %p97 = scmp.eq.s32.totalorder %s17, 1
    %p98 = por %p96, %p97
    %p99 = scmp.ne.s32.totalorder %s90, %s91
    %p100 = scmp.eq.s32.totalorder %s17, 0
    %p101 = por %p99, %p100
    %p102 = scmp.ne.s32.totalorder %s90, %s91
    %p103 = scmp.eq.s32.totalorder %s18, 1
    %p104 = por %p102, %p103
    %p106 = scmp.ne.s32.totalorder %s91, %s105
    %p107 = scmp.eq.s32.totalorder %s18, 0
    %p108 = por %p106, %p107
    %s110 = sadd.s32 %s109, 1
    %p113 = scmp.eq.s32.totalorder %s12, 1
    %p114 = scmp.ne.s32.totalorder %s109, %s111
    %p115 = scmp.eq.s32.totalorder %s12, 0
    %p116 = por %p114, %p115
    %p117 = scmp.ne.s32.totalorder %s109, %s111
    %p118 = scmp.eq.s32.totalorder %s17, 1
    %p119 = por %p117, %p118
    %p120 = scmp.ne.s32.totalorder %s111, %s112
    %p121 = scmp.eq.s32.totalorder %s17, 0
    %p122 = por %p120, %p121
    %p123 = scmp.ne.s32.totalorder %s111, %s112
    %p124 = scmp.eq.s32.totalorder %s18, 1
    %p125 = por %p123, %p124
    %p127 = scmp.ne.s32.totalorder %s112, %s126
    %p128 = scmp.eq.s32.totalorder %s18, 0
    %p129 = por %p127, %p128
    %s131 = sadd.s32 %s130, 1
    %p134 = scmp.eq.s32.totalorder %s12, 1
    %p135 = scmp.ne.s32.totalorder %s130, %s132
    %p136 = scmp.eq.s32.totalorder %s12, 0
    %p137 = por %p135, %p136
    %p138 = scmp.ne.s32.totalorder %s130, %s132
    %p139 = scmp.eq.s32.totalorder %s17, 1
    %p140 = por %p138, %p139
    %p141 = scmp.ne.s32.totalorder %s132, %s133
    %p142 = scmp.eq.s32.totalorder %s17, 0
    %p143 = por %p141, %p142
    %p144 = scmp.ne.s32.totalorder %s132, %s133
    %p145 = scmp.eq.s32.totalorder %s18, 1
    %p146 = por %p144, %p145
    %p148 = scmp.ne.s32.totalorder %s133, %s147
    %p149 = scmp.eq.s32.totalorder %s18, 0
    %p150 = por %p148, %p149
    %s151 = ssub.s32 %s12, %s19
    %p152 = scmp.eq.s32.totalorder %s151, 0
    %s154 = sadd.s32 %s153, 1
    %s155 = scalar_select %p152, %s153, %s154
    %p158 = pneg %p152
    %p159 = scmp.eq.s32.totalorder %s12, 1
    %p160 = por %p158, %p159
    %p161 = scmp.ne.s32.totalorder %s153, %s156
    %p162 = scmp.eq.s32.totalorder %s12, 0
    %p163 = por %p161, %p162
    %p164 = scmp.ne.s32.totalorder %s153, %s156
    %p165 = scmp.eq.s32.totalorder %s17, 1
    %p166 = por %p164, %p165
    %p167 = scmp.ne.s32.totalorder %s156, %s157
    %p168 = scmp.eq.s32.totalorder %s17, 0
    %p169 = por %p167, %p168
    %p170 = scmp.ne.s32.totalorder %s156, %s157
    %p171 = scmp.eq.s32.totalorder %s18, 1
    %p172 = por %p170, %p171
    %p174 = scmp.ne.s32.totalorder %s157, %s173
    %p175 = scmp.eq.s32.totalorder %s18, 0
    %p176 = por %p174, %p175
    %p177 = scmp.le.s32.totalorder 1, %s12
    %p178 = scmp.lt.s32.totalorder %s12, 3
    %p179 = pnand %p177, %p178
    %p180 = pneg %p179
    // Predicated region
    $region9: #{final_patch_expand_x4.1} parent=5 // pred_check
      _
    $region10: #{final_patch_expand_x4.1} parent=5 // pred_check_branch
      %182 = sbr.rel (%p179) target = $region12
    $region11: #{final_patch_expand_x4.1} parent=5 // pred_region
      %s183 = ssub.s32 %s12, 1
      // Predicated region
      $region13: #{final_patch_expand_x4.1} parent=11 // pred_check
        %p184 = pneg %p59
      $region14: #{final_patch_expand_x4.1} parent=11 // pred_check_branch
        %186 = sbr.rel (%p184) target = $region16
      $region15: #{final_patch_expand_x4.1} parent=11 // pred_region
        _
      $region16: #{final_patch_expand_x4.1} parent=11 // pred_fallthru
        _
      // Predicated region
      $region17: #{final_patch_expand_x4.1} parent=11 // pred_check
        %p187 = pneg %p80
      $region18: #{final_patch_expand_x4.1} parent=11 // pred_check_branch
        %189 = sbr.rel (%p187) target = $region20
      $region19: #{final_patch_expand_x4.1} parent=11 // pred_region
        _
      $region20: #{final_patch_expand_x4.1} parent=11 // pred_fallthru
        _
      // Predicated region
      $region21: #{final_patch_expand_x4.1} parent=11 // pred_check
        %p190 = pneg %p101
      $region22: #{final_patch_expand_x4.1} parent=11 // pred_check_branch
        %192 = sbr.rel (%p190) target = $region24
      $region23: #{final_patch_expand_x4.1} parent=11 // pred_region
        _
      $region24: #{final_patch_expand_x4.1} parent=11 // pred_fallthru
        _
      // Predicated region
      $region25: #{final_patch_expand_x4.1} parent=11 // pred_check
        %p193 = pneg %p122
      $region26: #{final_patch_expand_x4.1} parent=11 // pred_check_branch
        %195 = sbr.rel (%p193) target = $region28
      $region27: #{final_patch_expand_x4.1} parent=11 // pred_region
        _
      $region28: #{final_patch_expand_x4.1} parent=11 // pred_fallthru
        _
      // Predicated region
      $region29: #{final_patch_expand_x4.1} parent=11 // pred_check
        %p196 = pneg %p143
      $region30: #{final_patch_expand_x4.1} parent=11 // pred_check_branch
        %198 = sbr.rel (%p196) target = $region32
      $region31: #{final_patch_expand_x4.1} parent=11 // pred_region
        _
      $region32: #{final_patch_expand_x4.1} parent=11 // pred_fallthru
        _
    $region12: #{final_patch_expand_x4.1} parent=5 // pred_fallthru
      _
    %p199 = scmp.lt.s32.totalorder %s12, 2
    // Predicated region
    $region33: #{final_patch_expand_x4.1} parent=5 // pred_check
      %p200 = pneg %p199
    $region34: #{final_patch_expand_x4.1} parent=5 // pred_check_branch
      %202 = sbr.rel (%p200) target = $region36
    $region35: #{final_patch_expand_x4.1} parent=5 // pred_region
      // Predicated region
      $region37: #{final_patch_expand_x4.1} parent=35 // pred_check
        %p203 = pneg %p32
      $region38: #{final_patch_expand_x4.1} parent=35 // pred_check_branch
        %205 = sbr.rel (%p203) target = $region40
      $region39: #{final_patch_expand_x4.1} parent=35 // pred_region
        %s206 = smul.u32 8, %s12
        %p207 = scmp.lt.s32.totalorder %s206, 15
        %s208 = scalar_select %p207, %s206, 15
        %s209 = smul.addr %s208, 8
        %s210 = scalar_lea.vmem %s0, %s209
        %s211 = smul.u32 8, %s12
      $region40: #{final_patch_expand_x4.1} parent=35 // pred_fallthru
        _
    $region36: #{final_patch_expand_x4.1} parent=5 // pred_fallthru
      _
    %p212 = scmp.le.s32.totalorder 1, %s12
    %p213 = scmp.lt.s32.totalorder %s12, 3
    %p214 = pnand %p212, %p213
    %p215 = pneg %p214
    // Predicated region
    $region41: #{final_patch_expand_x4.1} parent=5 // pred_check
      _
    $region42: #{final_patch_expand_x4.1} parent=5 // pred_check_branch
      %217 = sbr.rel (%p214) target = $region44
    $region43: #{final_patch_expand_x4.1} parent=5 // pred_region
      %s218 = ssub.s32 %s12, 1
      %s219 = smul.u32 8, %s17
      %p220 = scmp.lt.s32.totalorder %s219, 15
      %s221 = scalar_select %p220, %s219, 15
      %s222 = smul.addr %s221, 8
      %s223 = scalar_lea.vmem %s0, %s222
      %p224 = pneg %p38
      %p225 = pneg %p35
      %p226 = pneg %p59
      %p227 = pneg %p56
      %p228 = pneg %p80
      %p229 = pneg %p77
      %p230 = pneg %p101
      %p231 = pneg %p98
      %p232 = pneg %p122
      %p233 = pneg %p119
      %p234 = pneg %p143
      %p235 = pneg %p140
      %p236 = pneg %p169
      %p237 = pneg %p166
      %s238 = smul.u32 8, %s17
      %p239 = scmp.lt.s32.totalorder %s238, 15
      %s240 = scalar_select %p239, %s238, 15
      %s241 = smul.addr %s240, 4
      %s242 = smul.addr %s241, 8
      %s243 = scalar_lea.vmem %s6, %s242
      %s244 = smul.u32 8, %s17
      %p245 = scmp.lt.s32.totalorder %s244, 15
      %s246 = scalar_select %p245, %s244, 15
      %s247 = smul.addr %s246, 8
      %s248 = scalar_lea.vmem %s0, %s247
      %s249 = smul.u32 8, %s17
      %s250 = smul.u32 8, %s17
      %p251 = scmp.lt.s32.totalorder %s250, 15
      %s252 = scalar_select %p251, %s250, 15
      %s253 = smul.addr %s252, 4
      %s254 = smul.addr %s253, 8
      %s255 = scalar_lea.vmem %s6, %s254
      %s256 = smul.u32 8, %s17
      %v257 = vld [vmem:[%s248] sm:$0xff]
      %v258 = vld [vmem:[%s248 + $0x8] sm:$0xff]
      %v259 = vld [vmem:[%s248 + $0x10] sm:$0xff]
      %v260 = vld [vmem:[%s248 + $0x18] sm:$0xff]
      %v261 = vld [vmem:[%s248 + $0x20] sm:$0xff]
      %v262 = vld [vmem:[%s248 + $0x28] sm:$0xff]
      %v263 = vld [vmem:[%s248 + $0x30] sm:$0xff]
      %v264 = vld [vmem:[%s248 + $0x38] sm:$0xff]
      %v265 = vld [vmem:[%s1] sm:$0xff]
      %v266 = vld [vmem:[%s1 + $0x8] sm:$0xff]
      %v267 = vld [vmem:[%s1 + $0x10] sm:$0xff]
      %v268 = vld [vmem:[%s1 + $0x18] sm:$0xff]
      %v269 = vld [vmem:[%s1 + $0x20] sm:$0xff]
      %v270 = vld [vmem:[%s1 + $0x28] sm:$0xff]
      %v271 = vld [vmem:[%s1 + $0x30] sm:$0xff]
      %v272 = vld [vmem:[%s1 + $0x38] sm:$0xff]
      %v273 = vld [vmem:[%s1 + $0x40] sm:$0xff]
      %v274 = vld [vmem:[%s1 + $0x48] sm:$0xff]
      %v275 = vld [vmem:[%s1 + $0x50] sm:$0xff]
      %v276 = vld [vmem:[%s1 + $0x58] sm:$0xff]
      %v277 = vld [vmem:[%s1 + $0x60] sm:$0xff]
      %v278 = vld [vmem:[%s1 + $0x68] sm:$0xff]
      %v279 = vld [vmem:[%s1 + $0x70] sm:$0xff]
      %v280 = vld [vmem:[%s1 + $0x78] sm:$0xff]
      %vm281 = vcmask 261120
      %v283 = vsel %vm281, %v257, 0
      %v286 = vsel %vm281, %v258, 0
      %v289 = vsel %vm281, %v259, 0
      %v292 = vsel %vm281, %v260, 0
      %v295 = vsel %vm281, %v261, 0
      %v298 = vsel %vm281, %v262, 0
      %v301 = vsel %vm281, %v263, 0
      %v304 = vsel %vm281, %v264, 0
      %306 = vmatprep.subr.mxu0 0.0
      %307 = vmatpush1.msra.mxu0 0.0
      %308 = vmatprep.subr.mxu0 0.0
      %309 = vmatpush1.msra.mxu0 0.0
      %310 = vmatprep.subr.mxu0 0.0
      %311 = vmatpush1.msra.mxu0 0.0
      %312 = vmatprep.subr.mxu0 0.0
      %313 = vmatpush1.msra.mxu0 0.0
      %314 = vmatprep.subr.mxu0 0.0
      %315 = vmatpush1.msra.mxu0 0.0
      %316 = vmatprep.subr.mxu0 0.0
      %317 = vmatpush1.msra.mxu0 0.0
      %318 = vmatprep.subr.mxu0 0.0
      %319 = vmatpush1.msra.mxu0 0.0
      %320 = vmatprep.subr.mxu0 0.0
      %321 = vmatpush1.msra.mxu0 0.0
      %322 = vmatprep.subr.mxu0 0.0
      %323 = vmatpush1.msra.mxu0 0.0
      %324 = vmatprep.subr.mxu0 0.0
      %325 = vmatpush1.msra.mxu0 0.0
      %326 = vmatprep.subr.mxu0 0.0
      %327 = vmatpush1.msra.mxu0 0.0
      %328 = vmatprep.subr.mxu0 0.0
      %329 = vmatpush1.msra.mxu0 0.0
      %330 = vmatprep.subr.mxu0 %v278
      %331 = vmatpush1.msra.mxu0 %v277
      %332 = vmatprep.subr.mxu0 %v274
      %333 = vmatpush1.msra.mxu0 %v273
      %334 = vmatprep.subr.mxu0 %v270
      %335 = vmatpush1.msra.mxu0 %v269
      %336 = vmatprep.subr.mxu0 %v266
      %337 = vmatpush1.msra.mxu0 %v265
      %338 = vmatprep.subr.mxu0 0.0
      %339 = vmatpush2.msra.mxu0 0.0
      %340 = vmatprep.subr.mxu0 0.0
      %341 = vmatpush2.msra.mxu0 0.0
      %342 = vmatprep.subr.mxu0 0.0
      %343 = vmatpush2.msra.mxu0 0.0
      %344 = vmatprep.subr.mxu0 0.0
      %345 = vmatpush2.msra.mxu0 0.0
      %346 = vmatprep.subr.mxu0 0.0
      %347 = vmatpush2.msra.mxu0 0.0
      %348 = vmatprep.subr.mxu0 0.0
      %349 = vmatpush2.msra.mxu0 0.0
      %350 = vmatprep.subr.mxu0 0.0
      %351 = vmatpush2.msra.mxu0 0.0
      %352 = vmatprep.subr.mxu0 0.0
      %353 = vmatpush2.msra.mxu0 0.0
      %354 = vmatprep.subr.mxu0 0.0
      %355 = vmatpush2.msra.mxu0 0.0
      %356 = vmatprep.subr.mxu0 0.0
      %357 = vmatpush2.msra.mxu0 0.0
      %358 = vmatprep.subr.mxu0 0.0
      %359 = vmatpush2.msra.mxu0 0.0
      %360 = vmatprep.subr.mxu0 0.0
      %361 = vmatpush2.msra.mxu0 0.0
      %362 = vmatprep.subr.mxu0 0.0
      %363 = vmatpush2.msra.mxu0 0.0
      %364 = vmatprep.subr.mxu0 0.0
      %365 = vmatpush2.msra.mxu0 0.0
      %366 = vmatprep.subr.mxu0 0.0
      %367 = vmatpush2.msra.mxu0 0.0
      %368 = vmatprep.subr.mxu0 0.0
      %369 = vmatpush2.msra.mxu0 0.0
      %370 = vmatprep.mubr.f32.mxu0 0.0
      %371 = vmatmul.mubr.f32.gmra.mxu0 %v283
      %v372 = vpop.f32.mrf.mxu0
      %v373 = vadd.f32 0.0, %v372
      %v374 = vpop.f32.mrf.mxu0
      %v375 = vadd.f32 0.0, %v374
      %376 = vmatprep.mubr.f32.mxu0 0.0
      %377 = vmatmul.mubr.f32.gmra.mxu0 %v286
      %v378 = vpop.f32.mrf.mxu0
      %v379 = vadd.f32 0.0, %v378
      %v380 = vpop.f32.mrf.mxu0
      %v381 = vadd.f32 0.0, %v380
      %382 = vmatprep.mubr.f32.mxu0 0.0
      %383 = vmatmul.mubr.f32.gmra.mxu0 %v289
      %v384 = vpop.f32.mrf.mxu0
      %v385 = vadd.f32 0.0, %v384
      %v386 = vpop.f32.mrf.mxu0
      %v387 = vadd.f32 0.0, %v386
      %388 = vmatprep.mubr.f32.mxu0 0.0
      %389 = vmatmul.mubr.f32.gmra.mxu0 %v292
      %v390 = vpop.f32.mrf.mxu0
      %v391 = vadd.f32 0.0, %v390
      %v392 = vpop.f32.mrf.mxu0
      %v393 = vadd.f32 0.0, %v392
      %394 = vmatprep.mubr.f32.mxu0 0.0
      %395 = vmatmul.mubr.f32.gmra.mxu0 %v295
      %v396 = vpop.f32.mrf.mxu0
      %v397 = vadd.f32 0.0, %v396
      %v398 = vpop.f32.mrf.mxu0
      %v399 = vadd.f32 0.0, %v398
      %400 = vmatprep.mubr.f32.mxu0 0.0
      %401 = vmatmul.mubr.f32.gmra.mxu0 %v298
      %v402 = vpop.f32.mrf.mxu0
      %v403 = vadd.f32 0.0, %v402
      %v404 = vpop.f32.mrf.mxu0
      %v405 = vadd.f32 0.0, %v404
      %406 = vmatprep.mubr.f32.mxu0 0.0
      %407 = vmatmul.mubr.f32.gmra.mxu0 %v301
      %v408 = vpop.f32.mrf.mxu0
      %v409 = vadd.f32 0.0, %v408
      %v410 = vpop.f32.mrf.mxu0
      %v411 = vadd.f32 0.0, %v410
      %412 = vmatprep.mubr.f32.mxu0 0.0
      %413 = vmatmul.mubr.f32.gmra.mxu0 %v304
      %v414 = vpop.f32.mrf.mxu0
      %v415 = vadd.f32 0.0, %v414
      %v416 = vpop.f32.mrf.mxu0
      %v417 = vadd.f32 0.0, %v416
      %418 = vdwg.mxu0
      %419 = vmatprep.subr.mxu0 0.0
      %420 = vmatpush1.msra.mxu0 0.0
      %421 = vmatprep.subr.mxu0 0.0
      %422 = vmatpush1.msra.mxu0 0.0
      %423 = vmatprep.subr.mxu0 0.0
      %424 = vmatpush1.msra.mxu0 0.0
      %425 = vmatprep.subr.mxu0 0.0
      %426 = vmatpush1.msra.mxu0 0.0
      %427 = vmatprep.subr.mxu0 0.0
      %428 = vmatpush1.msra.mxu0 0.0
      %429 = vmatprep.subr.mxu0 0.0
      %430 = vmatpush1.msra.mxu0 0.0
      %431 = vmatprep.subr.mxu0 0.0
      %432 = vmatpush1.msra.mxu0 0.0
      %433 = vmatprep.subr.mxu0 0.0
      %434 = vmatpush1.msra.mxu0 0.0
      %435 = vmatprep.subr.mxu0 0.0
      %436 = vmatpush1.msra.mxu0 0.0
      %437 = vmatprep.subr.mxu0 0.0
      %438 = vmatpush1.msra.mxu0 0.0
      %439 = vmatprep.subr.mxu0 0.0
      %440 = vmatpush1.msra.mxu0 0.0
      %441 = vmatprep.subr.mxu0 0.0
      %442 = vmatpush1.msra.mxu0 0.0
      %443 = vmatprep.subr.mxu0 %v280
      %444 = vmatpush1.msra.mxu0 %v279
      %445 = vmatprep.subr.mxu0 %v276
      %446 = vmatpush1.msra.mxu0 %v275
      %447 = vmatprep.subr.mxu0 %v272
      %448 = vmatpush1.msra.mxu0 %v271
      %449 = vmatprep.subr.mxu0 %v268
      %450 = vmatpush1.msra.mxu0 %v267
      %451 = vmatprep.subr.mxu0 0.0
      %452 = vmatpush2.msra.mxu0 0.0
      %453 = vmatprep.subr.mxu0 0.0
      %454 = vmatpush2.msra.mxu0 0.0
      %455 = vmatprep.subr.mxu0 0.0
      %456 = vmatpush2.msra.mxu0 0.0
      %457 = vmatprep.subr.mxu0 0.0
      %458 = vmatpush2.msra.mxu0 0.0
      %459 = vmatprep.subr.mxu0 0.0
      %460 = vmatpush2.msra.mxu0 0.0
      %461 = vmatprep.subr.mxu0 0.0
      %462 = vmatpush2.msra.mxu0 0.0
      %463 = vmatprep.subr.mxu0 0.0
      %464 = vmatpush2.msra.mxu0 0.0
      %465 = vmatprep.subr.mxu0 0.0
      %466 = vmatpush2.msra.mxu0 0.0
      %467 = vmatprep.subr.mxu0 0.0
      %468 = vmatpush2.msra.mxu0 0.0
      %469 = vmatprep.subr.mxu0 0.0
      %470 = vmatpush2.msra.mxu0 0.0
      %471 = vmatprep.subr.mxu0 0.0
      %472 = vmatpush2.msra.mxu0 0.0
      %473 = vmatprep.subr.mxu0 0.0
      %474 = vmatpush2.msra.mxu0 0.0
      %475 = vmatprep.subr.mxu0 0.0
      %476 = vmatpush2.msra.mxu0 0.0
      %477 = vmatprep.subr.mxu0 0.0
      %478 = vmatpush2.msra.mxu0 0.0
      %479 = vmatprep.subr.mxu0 0.0
      %480 = vmatpush2.msra.mxu0 0.0
      %481 = vmatprep.subr.mxu0 0.0
      %482 = vmatpush2.msra.mxu0 0.0
      %483 = vmatprep.mubr.f32.mxu0 0.0
      %484 = vmatmul.mubr.f32.gmra.mxu0 %v283
      %v485 = vpop.f32.mrf.mxu0
      %v486 = vadd.f32 0.0, %v485
      %v487 = vpop.f32.mrf.mxu0
      %v488 = vadd.f32 0.0, %v487
      %489 = vmatprep.mubr.f32.mxu0 0.0
      %490 = vmatmul.mubr.f32.gmra.mxu0 %v286
      %v491 = vpop.f32.mrf.mxu0
      %v492 = vadd.f32 0.0, %v491
      %v493 = vpop.f32.mrf.mxu0
      %v494 = vadd.f32 0.0, %v493
      %495 = vmatprep.mubr.f32.mxu0 0.0
      %496 = vmatmul.mubr.f32.gmra.mxu0 %v289
      %v497 = vpop.f32.mrf.mxu0
      %v498 = vadd.f32 0.0, %v497
      %v499 = vpop.f32.mrf.mxu0
      %v500 = vadd.f32 0.0, %v499
      %501 = vmatprep.mubr.f32.mxu0 0.0
      %502 = vmatmul.mubr.f32.gmra.mxu0 %v292
      %v503 = vpop.f32.mrf.mxu0
      %v504 = vadd.f32 0.0, %v503
      %v505 = vpop.f32.mrf.mxu0
      %v506 = vadd.f32 0.0, %v505
      %507 = vmatprep.mubr.f32.mxu0 0.0
      %508 = vmatmul.mubr.f32.gmra.mxu0 %v295
      %v509 = vpop.f32.mrf.mxu0
      %v510 = vadd.f32 0.0, %v509
      %v511 = vpop.f32.mrf.mxu0
      %v512 = vadd.f32 0.0, %v511
      %513 = vmatprep.mubr.f32.mxu0 0.0
      %514 = vmatmul.mubr.f32.gmra.mxu0 %v298
      %v515 = vpop.f32.mrf.mxu0
      %v516 = vadd.f32 0.0, %v515
      %v517 = vpop.f32.mrf.mxu0
      %v518 = vadd.f32 0.0, %v517
      %519 = vmatprep.mubr.f32.mxu0 0.0
      %520 = vmatmul.mubr.f32.gmra.mxu0 %v301
      %v521 = vpop.f32.mrf.mxu0
      %v522 = vadd.f32 0.0, %v521
      %v523 = vpop.f32.mrf.mxu0
      %v524 = vadd.f32 0.0, %v523
      %525 = vmatprep.mubr.f32.mxu0 0.0
      %526 = vmatmul.mubr.f32.gmra.mxu0 %v304
      %v527 = vpop.f32.mrf.mxu0
      %v528 = vadd.f32 0.0, %v527
      %v529 = vpop.f32.mrf.mxu0
      %v530 = vadd.f32 0.0, %v529
      %531 = vdwg.mxu0
      %v532 = vmul.f32 %v373, %v373
      %v533 = vmul.f32 %v375, %v375
      %v534 = vmul.f32 %v486, %v486
      %v535 = vmul.f32 %v488, %v488
      %v536 = vmul.f32 %v379, %v379
      %v537 = vmul.f32 %v381, %v381
      %v538 = vmul.f32 %v492, %v492
      %v539 = vmul.f32 %v494, %v494
      %v540 = vmul.f32 %v385, %v385
      %v541 = vmul.f32 %v387, %v387
      %v542 = vmul.f32 %v498, %v498
      %v543 = vmul.f32 %v500, %v500
      %v544 = vmul.f32 %v391, %v391
      %v545 = vmul.f32 %v393, %v393
      %v546 = vmul.f32 %v504, %v504
      %v547 = vmul.f32 %v506, %v506
      %v548 = vmul.f32 %v397, %v397
      %v549 = vmul.f32 %v399, %v399
      %v550 = vmul.f32 %v510, %v510
      %v551 = vmul.f32 %v512, %v512
      %v552 = vmul.f32 %v403, %v403
      %v553 = vmul.f32 %v405, %v405
      %v554 = vmul.f32 %v516, %v516
      %v555 = vmul.f32 %v518, %v518
      %v556 = vmul.f32 %v409, %v409
      %v557 = vmul.f32 %v411, %v411
      %v558 = vmul.f32 %v522, %v522
      %v559 = vmul.f32 %v524, %v524
      %v560 = vmul.f32 %v415, %v415
      %v561 = vmul.f32 %v417, %v417
      %v562 = vmul.f32 %v528, %v528
      %v563 = vmul.f32 %v530, %v530
      %v564 = vld [vmem:[%s2] sm:$0xff]
      %v565 = vld [vmem:[%s2 + $0x8] sm:$0xff]
      %v566 = vld [vmem:[%s2 + $0x10] sm:$0xff]
      %v567 = vld [vmem:[%s2 + $0x18] sm:$0xff]
      %v568 = vld [vmem:[%s2 + $0x20] sm:$0xff]
      %v569 = vld [vmem:[%s2 + $0x28] sm:$0xff]
      %v570 = vld [vmem:[%s2 + $0x30] sm:$0xff]
      %v571 = vld [vmem:[%s2 + $0x38] sm:$0xff]
      %v572 = vld [vmem:[%s2 + $0x40] sm:$0xff]
      %v573 = vld [vmem:[%s2 + $0x48] sm:$0xff]
      %v574 = vld [vmem:[%s2 + $0x50] sm:$0xff]
      %v575 = vld [vmem:[%s2 + $0x58] sm:$0xff]
      %v576 = vld [vmem:[%s2 + $0x60] sm:$0xff]
      %v577 = vld [vmem:[%s2 + $0x68] sm:$0xff]
      %v578 = vld [vmem:[%s2 + $0x70] sm:$0xff]
      %v579 = vld [vmem:[%s2 + $0x78] sm:$0xff]
      %v580 = vld [vmem:[%s2 + $0x80] sm:$0xff]
      %v581 = vld [vmem:[%s2 + $0x88] sm:$0xff]
      %v582 = vld [vmem:[%s2 + $0x90] sm:$0xff]
      %v583 = vld [vmem:[%s2 + $0x98] sm:$0xff]
      %v584 = vld [vmem:[%s2 + $0xa0] sm:$0xff]
      %v585 = vld [vmem:[%s2 + $0xa8] sm:$0xff]
      %v586 = vld [vmem:[%s2 + $0xb0] sm:$0xff]
      %v587 = vld [vmem:[%s2 + $0xb8] sm:$0xff]
      %v588 = vld [vmem:[%s2 + $0xc0] sm:$0xff]
      %v589 = vld [vmem:[%s2 + $0xc8] sm:$0xff]
      %v590 = vld [vmem:[%s2 + $0xd0] sm:$0xff]
      %v591 = vld [vmem:[%s2 + $0xd8] sm:$0xff]
      %v592 = vld [vmem:[%s2 + $0xe0] sm:$0xff]
      %v593 = vld [vmem:[%s2 + $0xe8] sm:$0xff]
      %v594 = vld [vmem:[%s2 + $0xf0] sm:$0xff]
      %v595 = vld [vmem:[%s2 + $0xf8] sm:$0xff]
      %v596 = vld [vmem:[%s2 + $0x100] sm:$0xff]
      %v597 = vld [vmem:[%s2 + $0x108] sm:$0xff]
      %v598 = vld [vmem:[%s2 + $0x110] sm:$0xff]
      %v599 = vld [vmem:[%s2 + $0x118] sm:$0xff]
      %v600 = vld [vmem:[%s2 + $0x120] sm:$0xff]
      %v601 = vld [vmem:[%s2 + $0x128] sm:$0xff]
      %v602 = vld [vmem:[%s2 + $0x130] sm:$0xff]
      %v603 = vld [vmem:[%s2 + $0x138] sm:$0xff]
      %v604 = vld [vmem:[%s2 + $0x140] sm:$0xff]
      %v605 = vld [vmem:[%s2 + $0x148] sm:$0xff]
      %v606 = vld [vmem:[%s2 + $0x150] sm:$0xff]
      %v607 = vld [vmem:[%s2 + $0x158] sm:$0xff]
      %v608 = vld [vmem:[%s2 + $0x160] sm:$0xff]
      %v609 = vld [vmem:[%s2 + $0x168] sm:$0xff]
      %v610 = vld [vmem:[%s2 + $0x170] sm:$0xff]
      %v611 = vld [vmem:[%s2 + $0x178] sm:$0xff]
      %v612 = vld [vmem:[%s2 + $0x180] sm:$0xff]
      %v613 = vld [vmem:[%s2 + $0x188] sm:$0xff]
      %v614 = vld [vmem:[%s2 + $0x190] sm:$0xff]
      %v615 = vld [vmem:[%s2 + $0x198] sm:$0xff]
      %v616 = vld [vmem:[%s2 + $0x1a0] sm:$0xff]
      %v617 = vld [vmem:[%s2 + $0x1a8] sm:$0xff]
      %v618 = vld [vmem:[%s2 + $0x1b0] sm:$0xff]
      %v619 = vld [vmem:[%s2 + $0x1b8] sm:$0xff]
      %v620 = vld [vmem:[%s2 + $0x1c0] sm:$0xff]
      %v621 = vld [vmem:[%s2 + $0x1c8] sm:$0xff]
      %v622 = vld [vmem:[%s2 + $0x1d0] sm:$0xff]
      %v623 = vld [vmem:[%s2 + $0x1d8] sm:$0xff]
      %v624 = vld [vmem:[%s2 + $0x1e0] sm:$0xff]
      %v625 = vld [vmem:[%s2 + $0x1e8] sm:$0xff]
      %v626 = vld [vmem:[%s2 + $0x1f0] sm:$0xff]
      %v627 = vld [vmem:[%s2 + $0x1f8] sm:$0xff]
      %628 = vmatprep.subr.mxu0 0.0
      %629 = vmatpush1.msra.mxu0 %v579
      %630 = vmatprep.subr.mxu0 0.0
      %631 = vmatpush1.msra.mxu0 %v578
      %632 = vmatprep.subr.mxu0 0.0
      %633 = vmatpush1.msra.mxu0 %v577
      %634 = vmatprep.subr.mxu0 0.0
      %635 = vmatpush1.msra.mxu0 %v576
      %636 = vmatprep.subr.mxu0 0.0
      %637 = vmatpush1.msra.mxu0 %v575
      %638 = vmatprep.subr.mxu0 0.0
      %639 = vmatpush1.msra.mxu0 %v574
      %640 = vmatprep.subr.mxu0 0.0
      %641 = vmatpush1.msra.mxu0 %v573
      %642 = vmatprep.subr.mxu0 0.0
      %643 = vmatpush1.msra.mxu0 %v572
      %644 = vmatprep.subr.mxu0 0.0
      %645 = vmatpush1.msra.mxu0 %v571
      %646 = vmatprep.subr.mxu0 0.0
      %647 = vmatpush1.msra.mxu0 %v570
      %648 = vmatprep.subr.mxu0 0.0
      %649 = vmatpush1.msra.mxu0 %v569
      %650 = vmatprep.subr.mxu0 0.0
      %651 = vmatpush1.msra.mxu0 %v568
      %652 = vmatprep.subr.mxu0 0.0
      %653 = vmatpush1.msra.mxu0 %v567
      %654 = vmatprep.subr.mxu0 0.0
      %655 = vmatpush1.msra.mxu0 %v566
      %656 = vmatprep.subr.mxu0 0.0
      %657 = vmatpush1.msra.mxu0 %v565
      %658 = vmatprep.subr.mxu0 0.0
      %659 = vmatpush1.msra.mxu0 %v564
      %660 = vmatprep.subr.mxu0 0.0
      %661 = vmatpush2.msra.mxu0 %v595
      %662 = vmatprep.subr.mxu0 0.0
      %663 = vmatpush2.msra.mxu0 %v594
      %664 = vmatprep.subr.mxu0 0.0
      %665 = vmatpush2.msra.mxu0 %v593
      %666 = vmatprep.subr.mxu0 0.0
      %667 = vmatpush2.msra.mxu0 %v592
      %668 = vmatprep.subr.mxu0 0.0
      %669 = vmatpush2.msra.mxu0 %v591
      %670 = vmatprep.subr.mxu0 0.0
      %671 = vmatpush2.msra.mxu0 %v590
      %672 = vmatprep.subr.mxu0 0.0
      %673 = vmatpush2.msra.mxu0 %v589
      %674 = vmatprep.subr.mxu0 0.0
      %675 = vmatpush2.msra.mxu0 %v588
      %676 = vmatprep.subr.mxu0 0.0
      %677 = vmatpush2.msra.mxu0 %v587
      %678 = vmatprep.subr.mxu0 0.0
      %679 = vmatpush2.msra.mxu0 %v586
      %680 = vmatprep.subr.mxu0 0.0
      %681 = vmatpush2.msra.mxu0 %v585
      %682 = vmatprep.subr.mxu0 0.0
      %683 = vmatpush2.msra.mxu0 %v584
      %684 = vmatprep.subr.mxu0 0.0
      %685 = vmatpush2.msra.mxu0 %v583
      %686 = vmatprep.subr.mxu0 0.0
      %687 = vmatpush2.msra.mxu0 %v582
      %688 = vmatprep.subr.mxu0 0.0
      %689 = vmatpush2.msra.mxu0 %v581
      %690 = vmatprep.subr.mxu0 0.0
      %691 = vmatpush2.msra.mxu0 %v580
      %692 = vmatprep.mubr.f32.mxu0 %v533
      %693 = vmatmul.mubr.f32.gmra.mxu0 %v532
      %v694 = vpop.f32.mrf.mxu0
      %v695 = vadd.f32 0.0, %v694
      %v696 = vpop.f32.mrf.mxu0
      %697 = vmatprep.mubr.f32.mxu0 %v537
      %698 = vmatmul.mubr.f32.gmra.mxu0 %v536
      %v699 = vpop.f32.mrf.mxu0
      %v700 = vadd.f32 0.0, %v699
      %v701 = vpop.f32.mrf.mxu0
      %702 = vmatprep.mubr.f32.mxu0 %v541
      %703 = vmatmul.mubr.f32.gmra.mxu0 %v540
      %v704 = vpop.f32.mrf.mxu0
      %v705 = vadd.f32 0.0, %v704
      %v706 = vpop.f32.mrf.mxu0
      %707 = vmatprep.mubr.f32.mxu0 %v545
      %708 = vmatmul.mubr.f32.gmra.mxu0 %v544
      %v709 = vpop.f32.mrf.mxu0
      %v710 = vadd.f32 0.0, %v709
      %v711 = vpop.f32.mrf.mxu0
      %712 = vmatprep.mubr.f32.mxu0 %v549
      %713 = vmatmul.mubr.f32.gmra.mxu0 %v548
      %v714 = vpop.f32.mrf.mxu0
      %v715 = vadd.f32 0.0, %v714
      %v716 = vpop.f32.mrf.mxu0
      %717 = vmatprep.mubr.f32.mxu0 %v553
      %718 = vmatmul.mubr.f32.gmra.mxu0 %v552
      %v719 = vpop.f32.mrf.mxu0
      %v720 = vadd.f32 0.0, %v719
      %v721 = vpop.f32.mrf.mxu0
      %722 = vmatprep.mubr.f32.mxu0 %v557
      %723 = vmatmul.mubr.f32.gmra.mxu0 %v556
      %v724 = vpop.f32.mrf.mxu0
      %v725 = vadd.f32 0.0, %v724
      %v726 = vpop.f32.mrf.mxu0
      %727 = vmatprep.mubr.f32.mxu0 %v561
      %728 = vmatmul.mubr.f32.gmra.mxu0 %v560
      %v729 = vpop.f32.mrf.mxu0
      %v730 = vadd.f32 0.0, %v729
      %v731 = vpop.f32.mrf.mxu0
      %732 = vdwg.mxu0
      %733 = vmatprep.subr.mxu0 0.0
      %734 = vmatpush1.msra.mxu0 %v611
      %735 = vmatprep.subr.mxu0 0.0
      %736 = vmatpush1.msra.mxu0 %v610
      %737 = vmatprep.subr.mxu0 0.0
      %738 = vmatpush1.msra.mxu0 %v609
      %739 = vmatprep.subr.mxu0 0.0
      %740 = vmatpush1.msra.mxu0 %v608
      %741 = vmatprep.subr.mxu0 0.0
      %742 = vmatpush1.msra.mxu0 %v607
      %743 = vmatprep.subr.mxu0 0.0
      %744 = vmatpush1.msra.mxu0 %v606
      %745 = vmatprep.subr.mxu0 0.0
      %746 = vmatpush1.msra.mxu0 %v605
      %747 = vmatprep.subr.mxu0 0.0
      %748 = vmatpush1.msra.mxu0 %v604
      %749 = vmatprep.subr.mxu0 0.0
      %750 = vmatpush1.msra.mxu0 %v603
      %751 = vmatprep.subr.mxu0 0.0
      %752 = vmatpush1.msra.mxu0 %v602
      %753 = vmatprep.subr.mxu0 0.0
      %754 = vmatpush1.msra.mxu0 %v601
      %755 = vmatprep.subr.mxu0 0.0
      %756 = vmatpush1.msra.mxu0 %v600
      %757 = vmatprep.subr.mxu0 0.0
      %758 = vmatpush1.msra.mxu0 %v599
      %759 = vmatprep.subr.mxu0 0.0
      %760 = vmatpush1.msra.mxu0 %v598
      %761 = vmatprep.subr.mxu0 0.0
      %762 = vmatpush1.msra.mxu0 %v597
      %763 = vmatprep.subr.mxu0 0.0
      %764 = vmatpush1.msra.mxu0 %v596
      %765 = vmatprep.subr.mxu0 0.0
      %766 = vmatpush2.msra.mxu0 %v627
      %767 = vmatprep.subr.mxu0 0.0
      %768 = vmatpush2.msra.mxu0 %v626
      %769 = vmatprep.subr.mxu0 0.0
      %770 = vmatpush2.msra.mxu0 %v625
      %771 = vmatprep.subr.mxu0 0.0
      %772 = vmatpush2.msra.mxu0 %v624
      %773 = vmatprep.subr.mxu0 0.0
      %774 = vmatpush2.msra.mxu0 %v623
      %775 = vmatprep.subr.mxu0 0.0
      %776 = vmatpush2.msra.mxu0 %v622
      %777 = vmatprep.subr.mxu0 0.0
      %778 = vmatpush2.msra.mxu0 %v621
      %779 = vmatprep.subr.mxu0 0.0
      %780 = vmatpush2.msra.mxu0 %v620
      %781 = vmatprep.subr.mxu0 0.0
      %782 = vmatpush2.msra.mxu0 %v619
      %783 = vmatprep.subr.mxu0 0.0
      %784 = vmatpush2.msra.mxu0 %v618
      %785 = vmatprep.subr.mxu0 0.0
      %786 = vmatpush2.msra.mxu0 %v617
      %787 = vmatprep.subr.mxu0 0.0
      %788 = vmatpush2.msra.mxu0 %v616
      %789 = vmatprep.subr.mxu0 0.0
      %790 = vmatpush2.msra.mxu0 %v615
      %791 = vmatprep.subr.mxu0 0.0
      %792 = vmatpush2.msra.mxu0 %v614
      %793 = vmatprep.subr.mxu0 0.0
      %794 = vmatpush2.msra.mxu0 %v613
      %795 = vmatprep.subr.mxu0 0.0
      %796 = vmatpush2.msra.mxu0 %v612
      %797 = vmatprep.mubr.f32.mxu0 %v535
      %798 = vmatmul.mubr.f32.gmra.mxu0 %v534
      %v799 = vpop.f32.mrf.mxu0
      %v800 = vadd.f32 %v695, %v799
      %v801 = vpop.f32.mrf.mxu0
      %802 = vmatprep.mubr.f32.mxu0 %v539
      %803 = vmatmul.mubr.f32.gmra.mxu0 %v538
      %v804 = vpop.f32.mrf.mxu0
      %v805 = vadd.f32 %v700, %v804
      %v806 = vpop.f32.mrf.mxu0
      %807 = vmatprep.mubr.f32.mxu0 %v543
      %808 = vmatmul.mubr.f32.gmra.mxu0 %v542
      %v809 = vpop.f32.mrf.mxu0
      %v810 = vadd.f32 %v705, %v809
      %v811 = vpop.f32.mrf.mxu0
      %812 = vmatprep.mubr.f32.mxu0 %v547
      %813 = vmatmul.mubr.f32.gmra.mxu0 %v546
      %v814 = vpop.f32.mrf.mxu0
      %v815 = vadd.f32 %v710, %v814
      %v816 = vpop.f32.mrf.mxu0
      %817 = vmatprep.mubr.f32.mxu0 %v551
      %818 = vmatmul.mubr.f32.gmra.mxu0 %v550
      %v819 = vpop.f32.mrf.mxu0
      %v820 = vadd.f32 %v715, %v819
      %v821 = vpop.f32.mrf.mxu0
      %822 = vmatprep.mubr.f32.mxu0 %v555
      %823 = vmatmul.mubr.f32.gmra.mxu0 %v554
      %v824 = vpop.f32.mrf.mxu0
      %v825 = vadd.f32 %v720, %v824
      %v826 = vpop.f32.mrf.mxu0
      %827 = vmatprep.mubr.f32.mxu0 %v559
      %828 = vmatmul.mubr.f32.gmra.mxu0 %v558
      %v829 = vpop.f32.mrf.mxu0
      %v830 = vadd.f32 %v725, %v829
      %v831 = vpop.f32.mrf.mxu0
      %832 = vmatprep.mubr.f32.mxu0 %v563
      %833 = vmatmul.mubr.f32.gmra.mxu0 %v562
      %v834 = vpop.f32.mrf.mxu0
      %v835 = vadd.f32 %v730, %v834
      %v836 = vpop.f32.mrf.mxu0
      %837 = vdwg.mxu0
      %v838 = vld [vmem:[%s3] sm:$0xff]
      %v839 = vld [vmem:[%s3 + $0x8] sm:$0xff]
      %v840 = vld [vmem:[%s3 + $0x10] sm:$0xff]
      %v841 = vld [vmem:[%s3 + $0x18] sm:$0xff]
      %v842 = vld [vmem:[%s3 + $0x20] sm:$0xff]
      %v843 = vld [vmem:[%s3 + $0x28] sm:$0xff]
      %v844 = vld [vmem:[%s3 + $0x30] sm:$0xff]
      %v845 = vld [vmem:[%s3 + $0x38] sm:$0xff]
      %vm846 = vcmask 130048
      %v848 = vsel %vm846, %v800, 0
      %v851 = vsel %vm846, %v805, 0
      %v854 = vsel %vm846, %v810, 0
      %v857 = vsel %vm846, %v815, 0
      %v860 = vsel %vm846, %v820, 0
      %v863 = vsel %vm846, %v825, 0
      %v866 = vsel %vm846, %v830, 0
      %v869 = vsel %vm846, %v835, 0
      %871 = vmatprep.subr.mxu0 0.0
      %872 = vmatpush1.msra.mxu0 0.0
      %873 = vmatprep.subr.mxu0 0.0
      %874 = vmatpush1.msra.mxu0 0.0
      %875 = vmatprep.subr.mxu0 0.0
      %876 = vmatpush1.msra.mxu0 0.0
      %877 = vmatprep.subr.mxu0 0.0
      %878 = vmatpush1.msra.mxu0 0.0
      %879 = vmatprep.subr.mxu0 0.0
      %880 = vmatpush1.msra.mxu0 0.0
      %881 = vmatprep.subr.mxu0 0.0
      %882 = vmatpush1.msra.mxu0 0.0
      %883 = vmatprep.subr.mxu0 0.0
      %884 = vmatpush1.msra.mxu0 0.0
      %885 = vmatprep.subr.mxu0 0.0
      %886 = vmatpush1.msra.mxu0 0.0
      %887 = vmatprep.subr.mxu0 0.0
      %888 = vmatpush1.msra.mxu0 0.0
      %889 = vmatprep.subr.mxu0 0.0
      %890 = vmatpush1.msra.mxu0 0.0
      %891 = vmatprep.subr.mxu0 0.0
      %892 = vmatpush1.msra.mxu0 0.0
      %893 = vmatprep.subr.mxu0 0.0
      %894 = vmatpush1.msra.mxu0 0.0
      %895 = vmatprep.subr.mxu0 0.0
      %896 = vmatpush1.msra.mxu0 0.0
      %897 = vmatprep.subr.mxu0 0.0
      %898 = vmatpush1.msra.mxu0 0.0
      %899 = vmatprep.subr.mxu0 %v843
      %900 = vmatpush1.msra.mxu0 %v842
      %901 = vmatprep.subr.mxu0 %v839
      %902 = vmatpush1.msra.mxu0 %v838
      %903 = vmatprep.subr.mxu0 0.0
      %904 = vmatpush2.msra.mxu0 0.0
      %905 = vmatprep.subr.mxu0 0.0
      %906 = vmatpush2.msra.mxu0 0.0
      %907 = vmatprep.subr.mxu0 0.0
      %908 = vmatpush2.msra.mxu0 0.0
      %909 = vmatprep.subr.mxu0 0.0
      %910 = vmatpush2.msra.mxu0 0.0
      %911 = vmatprep.subr.mxu0 0.0
      %912 = vmatpush2.msra.mxu0 0.0
      %913 = vmatprep.subr.mxu0 0.0
      %914 = vmatpush2.msra.mxu0 0.0
      %915 = vmatprep.subr.mxu0 0.0
      %916 = vmatpush2.msra.mxu0 0.0
      %917 = vmatprep.subr.mxu0 0.0
      %918 = vmatpush2.msra.mxu0 0.0
      %919 = vmatprep.subr.mxu0 0.0
      %920 = vmatpush2.msra.mxu0 0.0
      %921 = vmatprep.subr.mxu0 0.0
      %922 = vmatpush2.msra.mxu0 0.0
      %923 = vmatprep.subr.mxu0 0.0
      %924 = vmatpush2.msra.mxu0 0.0
      %925 = vmatprep.subr.mxu0 0.0
      %926 = vmatpush2.msra.mxu0 0.0
      %927 = vmatprep.subr.mxu0 0.0
      %928 = vmatpush2.msra.mxu0 0.0
      %929 = vmatprep.subr.mxu0 0.0
      %930 = vmatpush2.msra.mxu0 0.0
      %931 = vmatprep.subr.mxu0 0.0
      %932 = vmatpush2.msra.mxu0 0.0
      %933 = vmatprep.subr.mxu0 0.0
      %934 = vmatpush2.msra.mxu0 0.0
      %935 = vmatprep.mubr.f32.mxu0 0.0
      %936 = vmatmul.mubr.f32.gmra.mxu0 %v848
      %v937 = vpop.f32.mrf.mxu0
      %v938 = vadd.f32 0.0, %v937
      %v939 = vpop.f32.mrf.mxu0
      %v940 = vadd.f32 0.0, %v939
      %941 = vmatprep.mubr.f32.mxu0 0.0
      %942 = vmatmul.mubr.f32.gmra.mxu0 %v851
      %v943 = vpop.f32.mrf.mxu0
      %v944 = vadd.f32 0.0, %v943
      %v945 = vpop.f32.mrf.mxu0
      %v946 = vadd.f32 0.0, %v945
      %947 = vmatprep.mubr.f32.mxu0 0.0
      %948 = vmatmul.mubr.f32.gmra.mxu0 %v854
      %v949 = vpop.f32.mrf.mxu0
      %v950 = vadd.f32 0.0, %v949
      %v951 = vpop.f32.mrf.mxu0
      %v952 = vadd.f32 0.0, %v951
      %953 = vmatprep.mubr.f32.mxu0 0.0
      %954 = vmatmul.mubr.f32.gmra.mxu0 %v857
      %v955 = vpop.f32.mrf.mxu0
      %v956 = vadd.f32 0.0, %v955
      %v957 = vpop.f32.mrf.mxu0
      %v958 = vadd.f32 0.0, %v957
      %959 = vmatprep.mubr.f32.mxu0 0.0
      %960 = vmatmul.mubr.f32.gmra.mxu0 %v860
      %v961 = vpop.f32.mrf.mxu0
      %v962 = vadd.f32 0.0, %v961
      %v963 = vpop.f32.mrf.mxu0
      %v964 = vadd.f32 0.0, %v963
      %965 = vmatprep.mubr.f32.mxu0 0.0
      %966 = vmatmul.mubr.f32.gmra.mxu0 %v863
      %v967 = vpop.f32.mrf.mxu0
      %v968 = vadd.f32 0.0, %v967
      %v969 = vpop.f32.mrf.mxu0
      %v970 = vadd.f32 0.0, %v969
      %971 = vmatprep.mubr.f32.mxu0 0.0
      %972 = vmatmul.mubr.f32.gmra.mxu0 %v866
      %v973 = vpop.f32.mrf.mxu0
      %v974 = vadd.f32 0.0, %v973
      %v975 = vpop.f32.mrf.mxu0
      %v976 = vadd.f32 0.0, %v975
      %977 = vmatprep.mubr.f32.mxu0 0.0
      %978 = vmatmul.mubr.f32.gmra.mxu0 %v869
      %v979 = vpop.f32.mrf.mxu0
      %v980 = vadd.f32 0.0, %v979
      %v981 = vpop.f32.mrf.mxu0
      %v982 = vadd.f32 0.0, %v981
      %983 = vdwg.mxu0
      %984 = vmatprep.subr.mxu0 0.0
      %985 = vmatpush1.msra.mxu0 0.0
      %986 = vmatprep.subr.mxu0 0.0
      %987 = vmatpush1.msra.mxu0 0.0
      %988 = vmatprep.subr.mxu0 0.0
      %989 = vmatpush1.msra.mxu0 0.0
      %990 = vmatprep.subr.mxu0 0.0
      %991 = vmatpush1.msra.mxu0 0.0
      %992 = vmatprep.subr.mxu0 0.0
      %993 = vmatpush1.msra.mxu0 0.0
      %994 = vmatprep.subr.mxu0 0.0
      %995 = vmatpush1.msra.mxu0 0.0
      %996 = vmatprep.subr.mxu0 0.0
      %997 = vmatpush1.msra.mxu0 0.0
      %998 = vmatprep.subr.mxu0 0.0
      %999 = vmatpush1.msra.mxu0 0.0
      %1000 = vmatprep.subr.mxu0 0.0
      %1001 = vmatpush1.msra.mxu0 0.0
      %1002 = vmatprep.subr.mxu0 0.0
      %1003 = vmatpush1.msra.mxu0 0.0
      %1004 = vmatprep.subr.mxu0 0.0
      %1005 = vmatpush1.msra.mxu0 0.0
      %1006 = vmatprep.subr.mxu0 0.0
      %1007 = vmatpush1.msra.mxu0 0.0
      %1008 = vmatprep.subr.mxu0 0.0
      %1009 = vmatpush1.msra.mxu0 0.0
      %1010 = vmatprep.subr.mxu0 0.0
      %1011 = vmatpush1.msra.mxu0 0.0
      %1012 = vmatprep.subr.mxu0 %v845
      %1013 = vmatpush1.msra.mxu0 %v844
      %1014 = vmatprep.subr.mxu0 %v841
      %1015 = vmatpush1.msra.mxu0 %v840
      %1016 = vmatprep.subr.mxu0 0.0
      %1017 = vmatpush2.msra.mxu0 0.0
      %1018 = vmatprep.subr.mxu0 0.0
      %1019 = vmatpush2.msra.mxu0 0.0
      %1020 = vmatprep.subr.mxu0 0.0
      %1021 = vmatpush2.msra.mxu0 0.0
      %1022 = vmatprep.subr.mxu0 0.0
      %1023 = vmatpush2.msra.mxu0 0.0
      %1024 = vmatprep.subr.mxu0 0.0
      %1025 = vmatpush2.msra.mxu0 0.0
      %1026 = vmatprep.subr.mxu0 0.0
      %1027 = vmatpush2.msra.mxu0 0.0
      %1028 = vmatprep.subr.mxu0 0.0
      %1029 = vmatpush2.msra.mxu0 0.0
      %1030 = vmatprep.subr.mxu0 0.0
      %1031 = vmatpush2.msra.mxu0 0.0
      %1032 = vmatprep.subr.mxu0 0.0
      %1033 = vmatpush2.msra.mxu0 0.0
      %1034 = vmatprep.subr.mxu0 0.0
      %1035 = vmatpush2.msra.mxu0 0.0
      %1036 = vmatprep.subr.mxu0 0.0
      %1037 = vmatpush2.msra.mxu0 0.0
      %1038 = vmatprep.subr.mxu0 0.0
      %1039 = vmatpush2.msra.mxu0 0.0
      %1040 = vmatprep.subr.mxu0 0.0
      %1041 = vmatpush2.msra.mxu0 0.0
      %1042 = vmatprep.subr.mxu0 0.0
      %1043 = vmatpush2.msra.mxu0 0.0
      %1044 = vmatprep.subr.mxu0 0.0
      %1045 = vmatpush2.msra.mxu0 0.0
      %1046 = vmatprep.subr.mxu0 0.0
      %1047 = vmatpush2.msra.mxu0 0.0
      %1048 = vmatprep.mubr.f32.mxu0 0.0
      %1049 = vmatmul.mubr.f32.gmra.mxu0 %v848
      %v1050 = vpop.f32.mrf.mxu0
      %v1051 = vadd.f32 0.0, %v1050
      %v1052 = vpop.f32.mrf.mxu0
      %v1053 = vadd.f32 0.0, %v1052
      %1054 = vmatprep.mubr.f32.mxu0 0.0
      %1055 = vmatmul.mubr.f32.gmra.mxu0 %v851
      %v1056 = vpop.f32.mrf.mxu0
      %v1057 = vadd.f32 0.0, %v1056
      %v1058 = vpop.f32.mrf.mxu0
      %v1059 = vadd.f32 0.0, %v1058
      %1060 = vmatprep.mubr.f32.mxu0 0.0
      %1061 = vmatmul.mubr.f32.gmra.mxu0 %v854
      %v1062 = vpop.f32.mrf.mxu0
      %v1063 = vadd.f32 0.0, %v1062
      %v1064 = vpop.f32.mrf.mxu0
      %v1065 = vadd.f32 0.0, %v1064
      %1066 = vmatprep.mubr.f32.mxu0 0.0
      %1067 = vmatmul.mubr.f32.gmra.mxu0 %v857
      %v1068 = vpop.f32.mrf.mxu0
      %v1069 = vadd.f32 0.0, %v1068
      %v1070 = vpop.f32.mrf.mxu0
      %v1071 = vadd.f32 0.0, %v1070
      %1072 = vmatprep.mubr.f32.mxu0 0.0
      %1073 = vmatmul.mubr.f32.gmra.mxu0 %v860
      %v1074 = vpop.f32.mrf.mxu0
      %v1075 = vadd.f32 0.0, %v1074
      %v1076 = vpop.f32.mrf.mxu0
      %v1077 = vadd.f32 0.0, %v1076
      %1078 = vmatprep.mubr.f32.mxu0 0.0
      %1079 = vmatmul.mubr.f32.gmra.mxu0 %v863
      %v1080 = vpop.f32.mrf.mxu0
      %v1081 = vadd.f32 0.0, %v1080
      %v1082 = vpop.f32.mrf.mxu0
      %v1083 = vadd.f32 0.0, %v1082
      %1084 = vmatprep.mubr.f32.mxu0 0.0
      %1085 = vmatmul.mubr.f32.gmra.mxu0 %v866
      %v1086 = vpop.f32.mrf.mxu0
      %v1087 = vadd.f32 0.0, %v1086
      %v1088 = vpop.f32.mrf.mxu0
      %v1089 = vadd.f32 0.0, %v1088
      %1090 = vmatprep.mubr.f32.mxu0 0.0
      %1091 = vmatmul.mubr.f32.gmra.mxu0 %v869
      %v1092 = vpop.f32.mrf.mxu0
      %v1093 = vadd.f32 0.0, %v1092
      %v1094 = vpop.f32.mrf.mxu0
      %v1095 = vadd.f32 0.0, %v1094
      %1096 = vdwg.mxu0
      %v1097 = vmul.f32 %v938, 0.03125
      %v1098 = vmul.f32 %v940, 0.03125
      %v1099 = vmul.f32 %v1051, 0.03125
      %v1100 = vmul.f32 %v1053, 0.03125
      %v1101 = vmul.f32 %v944, 0.03125
      %v1102 = vmul.f32 %v946, 0.03125
      %v1103 = vmul.f32 %v1057, 0.03125
      %v1104 = vmul.f32 %v1059, 0.03125
      %v1105 = vmul.f32 %v950, 0.03125
      %v1106 = vmul.f32 %v952, 0.03125
      %v1107 = vmul.f32 %v1063, 0.03125
      %v1108 = vmul.f32 %v1065, 0.03125
      %v1109 = vmul.f32 %v956, 0.03125
      %v1110 = vmul.f32 %v958, 0.03125
      %v1111 = vmul.f32 %v1069, 0.03125
      %v1112 = vmul.f32 %v1071, 0.03125
      %v1113 = vmul.f32 %v962, 0.03125
      %v1114 = vmul.f32 %v964, 0.03125
      %v1115 = vmul.f32 %v1075, 0.03125
      %v1116 = vmul.f32 %v1077, 0.03125
      %v1117 = vmul.f32 %v968, 0.03125
      %v1118 = vmul.f32 %v970, 0.03125
      %v1119 = vmul.f32 %v1081, 0.03125
      %v1120 = vmul.f32 %v1083, 0.03125
      %v1121 = vmul.f32 %v974, 0.03125
      %v1122 = vmul.f32 %v976, 0.03125
      %v1123 = vmul.f32 %v1087, 0.03125
      %v1124 = vmul.f32 %v1089, 0.03125
      %v1125 = vmul.f32 %v980, 0.03125
      %v1126 = vmul.f32 %v982, 0.03125
      %v1127 = vmul.f32 %v1093, 0.03125
      %v1128 = vmul.f32 %v1095, 0.03125
      %v1129 = vadd.f32 %v1097, 1e-05
      %v1130 = vadd.f32 %v1098, 1e-05
      %v1131 = vadd.f32 %v1099, 1e-05
      %v1132 = vadd.f32 %v1100, 1e-05
      %v1133 = vadd.f32 %v1101, 1e-05
      %v1134 = vadd.f32 %v1102, 1e-05
      %v1135 = vadd.f32 %v1103, 1e-05
      %v1136 = vadd.f32 %v1104, 1e-05
      %v1137 = vadd.f32 %v1105, 1e-05
      %v1138 = vadd.f32 %v1106, 1e-05
      %v1139 = vadd.f32 %v1107, 1e-05
      %v1140 = vadd.f32 %v1108, 1e-05
      %v1141 = vadd.f32 %v1109, 1e-05
      %v1142 = vadd.f32 %v1110, 1e-05
      %v1143 = vadd.f32 %v1111, 1e-05
      %v1144 = vadd.f32 %v1112, 1e-05
      %v1145 = vadd.f32 %v1113, 1e-05
      %v1146 = vadd.f32 %v1114, 1e-05
      %v1147 = vadd.f32 %v1115, 1e-05
      %v1148 = vadd.f32 %v1116, 1e-05
      %v1149 = vadd.f32 %v1117, 1e-05
      %v1150 = vadd.f32 %v1118, 1e-05
      %v1151 = vadd.f32 %v1119, 1e-05
      %v1152 = vadd.f32 %v1120, 1e-05
      %v1153 = vadd.f32 %v1121, 1e-05
      %v1154 = vadd.f32 %v1122, 1e-05
      %v1155 = vadd.f32 %v1123, 1e-05
      %v1156 = vadd.f32 %v1124, 1e-05
      %v1157 = vadd.f32 %v1125, 1e-05
      %v1158 = vadd.f32 %v1126, 1e-05
      %v1159 = vadd.f32 %v1127, 1e-05
      %v1160 = vadd.f32 %v1128, 1e-05
      %v1161 = vrsqrt.pop %v1129
      %v1162 = vrsqrt.pop %v1130
      %v1163 = vrsqrt.pop %v1131
      %v1164 = vrsqrt.pop %v1132
      %v1165 = vrsqrt.pop %v1133
      %v1166 = vrsqrt.pop %v1134
      %v1167 = vrsqrt.pop %v1135
      %v1168 = vrsqrt.pop %v1136
      %v1169 = vrsqrt.pop %v1137
      %v1170 = vrsqrt.pop %v1138
      %v1171 = vrsqrt.pop %v1139
      %v1172 = vrsqrt.pop %v1140
      %v1173 = vrsqrt.pop %v1141
      %v1174 = vrsqrt.pop %v1142
      %v1175 = vrsqrt.pop %v1143
      %v1176 = vrsqrt.pop %v1144
      %v1177 = vrsqrt.pop %v1145
      %v1178 = vrsqrt.pop %v1146
      %v1179 = vrsqrt.pop %v1147
      %v1180 = vrsqrt.pop %v1148
      %v1181 = vrsqrt.pop %v1149
      %v1182 = vrsqrt.pop %v1150
      %v1183 = vrsqrt.pop %v1151
      %v1184 = vrsqrt.pop %v1152
      %v1185 = vrsqrt.pop %v1153
      %v1186 = vrsqrt.pop %v1154
      %v1187 = vrsqrt.pop %v1155
      %v1188 = vrsqrt.pop %v1156
      %v1189 = vrsqrt.pop %v1157
      %v1190 = vrsqrt.pop %v1158
      %v1191 = vrsqrt.pop %v1159
      %v1192 = vrsqrt.pop %v1160
      %v1193 = vmul.f32 %v373, %v1161
      %v1194 = vmul.f32 %v375, %v1162
      %v1195 = vmul.f32 %v486, %v1163
      %v1196 = vmul.f32 %v488, %v1164
      %v1197 = vmul.f32 %v379, %v1165
      %v1198 = vmul.f32 %v381, %v1166
      %v1199 = vmul.f32 %v492, %v1167
      %v1200 = vmul.f32 %v494, %v1168
      %v1201 = vmul.f32 %v385, %v1169
      %v1202 = vmul.f32 %v387, %v1170
      %v1203 = vmul.f32 %v498, %v1171
      %v1204 = vmul.f32 %v500, %v1172
      %v1205 = vmul.f32 %v391, %v1173
      %v1206 = vmul.f32 %v393, %v1174
      %v1207 = vmul.f32 %v504, %v1175
      %v1208 = vmul.f32 %v506, %v1176
      %v1209 = vmul.f32 %v397, %v1177
      %v1210 = vmul.f32 %v399, %v1178
      %v1211 = vmul.f32 %v510, %v1179
      %v1212 = vmul.f32 %v512, %v1180
      %v1213 = vmul.f32 %v403, %v1181
      %v1214 = vmul.f32 %v405, %v1182
      %v1215 = vmul.f32 %v516, %v1183
      %v1216 = vmul.f32 %v518, %v1184
      %v1217 = vmul.f32 %v409, %v1185
      %v1218 = vmul.f32 %v411, %v1186
      %v1219 = vmul.f32 %v522, %v1187
      %v1220 = vmul.f32 %v524, %v1188
      %v1221 = vmul.f32 %v415, %v1189
      %v1222 = vmul.f32 %v417, %v1190
      %v1223 = vmul.f32 %v528, %v1191
      %v1224 = vmul.f32 %v530, %v1192
      %v1225 = vld [vmem:[%s4] sm:$0xf]
      %v1227 = vlaneseq
      %v1228 = vshrl.u32 %v1227, 7
      %v1229 = vsub.s32 0, %v1228
      %v1230 = vrot.slane %v1225, %v1229
      %v1231 = vlaneseq
      %v1232 = vshrl.u32 %v1231, 7
      %v1233 = vsub.s32 1, %v1232
      %v1234 = vrot.slane %v1225, %v1233
      %v1235 = vlaneseq
      %v1236 = vshrl.u32 %v1235, 7
      %v1237 = vsub.s32 2, %v1236
      %v1238 = vrot.slane %v1225, %v1237
      %v1239 = vlaneseq
      %v1240 = vshrl.u32 %v1239, 7
      %v1241 = vsub.s32 3, %v1240
      %v1242 = vrot.slane %v1225, %v1241
      %v1247 = vmul.f32 %v1193, %v1230
      %v1248 = vmul.f32 %v1194, %v1234
      %v1249 = vmul.f32 %v1195, %v1238
      %v1250 = vmul.f32 %v1196, %v1242
      %v1251 = vmul.f32 %v1197, %v1230
      %v1252 = vmul.f32 %v1198, %v1234
      %v1253 = vmul.f32 %v1199, %v1238
      %v1254 = vmul.f32 %v1200, %v1242
      %v1255 = vmul.f32 %v1201, %v1230
      %v1256 = vmul.f32 %v1202, %v1234
      %v1257 = vmul.f32 %v1203, %v1238
      %v1258 = vmul.f32 %v1204, %v1242
      %v1259 = vmul.f32 %v1205, %v1230
      %v1260 = vmul.f32 %v1206, %v1234
      %v1261 = vmul.f32 %v1207, %v1238
      %v1262 = vmul.f32 %v1208, %v1242
      %v1263 = vmul.f32 %v1209, %v1230
      %v1264 = vmul.f32 %v1210, %v1234
      %v1265 = vmul.f32 %v1211, %v1238
      %v1266 = vmul.f32 %v1212, %v1242
      %v1267 = vmul.f32 %v1213, %v1230
      %v1268 = vmul.f32 %v1214, %v1234
      %v1269 = vmul.f32 %v1215, %v1238
      %v1270 = vmul.f32 %v1216, %v1242
      %v1271 = vmul.f32 %v1217, %v1230
      %v1272 = vmul.f32 %v1218, %v1234
      %v1273 = vmul.f32 %v1219, %v1238
      %v1274 = vmul.f32 %v1220, %v1242
      %v1275 = vmul.f32 %v1221, %v1230
      %v1276 = vmul.f32 %v1222, %v1234
      %v1277 = vmul.f32 %v1223, %v1238
      %v1278 = vmul.f32 %v1224, %v1242
      %v1279 = vld [vmem:[%s5] sm:$0xf]
      %v1281 = vlaneseq
      %v1282 = vshrl.u32 %v1281, 7
      %v1283 = vsub.s32 0, %v1282
      %v1284 = vrot.slane %v1279, %v1283
      %v1285 = vlaneseq
      %v1286 = vshrl.u32 %v1285, 7
      %v1287 = vsub.s32 1, %v1286
      %v1288 = vrot.slane %v1279, %v1287
      %v1289 = vlaneseq
      %v1290 = vshrl.u32 %v1289, 7
      %v1291 = vsub.s32 2, %v1290
      %v1292 = vrot.slane %v1279, %v1291
      %v1293 = vlaneseq
      %v1294 = vshrl.u32 %v1293, 7
      %v1295 = vsub.s32 3, %v1294
      %v1296 = vrot.slane %v1279, %v1295
      %v1301 = vadd.f32 %v1247, %v1284
      %v1302 = vadd.f32 %v1248, %v1288
      %v1303 = vadd.f32 %v1249, %v1292
      %v1304 = vadd.f32 %v1250, %v1296
      %v1305 = vadd.f32 %v1251, %v1284
      %v1306 = vadd.f32 %v1252, %v1288
      %v1307 = vadd.f32 %v1253, %v1292
      %v1308 = vadd.f32 %v1254, %v1296
      %v1309 = vadd.f32 %v1255, %v1284
      %v1310 = vadd.f32 %v1256, %v1288
      %v1311 = vadd.f32 %v1257, %v1292
      %v1312 = vadd.f32 %v1258, %v1296
      %v1313 = vadd.f32 %v1259, %v1284
      %v1314 = vadd.f32 %v1260, %v1288
      %v1315 = vadd.f32 %v1261, %v1292
      %v1316 = vadd.f32 %v1262, %v1296
      %v1317 = vadd.f32 %v1263, %v1284
      %v1318 = vadd.f32 %v1264, %v1288
      %v1319 = vadd.f32 %v1265, %v1292
      %v1320 = vadd.f32 %v1266, %v1296
      %v1321 = vadd.f32 %v1267, %v1284
      %v1322 = vadd.f32 %v1268, %v1288
      %v1323 = vadd.f32 %v1269, %v1292
      %v1324 = vadd.f32 %v1270, %v1296
      %v1325 = vadd.f32 %v1271, %v1284
      %v1326 = vadd.f32 %v1272, %v1288
      %v1327 = vadd.f32 %v1273, %v1292
      %v1328 = vadd.f32 %v1274, %v1296
      %v1329 = vadd.f32 %v1275, %v1284
      %v1330 = vadd.f32 %v1276, %v1288
      %v1331 = vadd.f32 %v1277, %v1292
      %v1332 = vadd.f32 %v1278, %v1296
      %1333 = vst [vmem:[%s255] sm:$0xff] %v1301
      %1334 = vst [vmem:[%s255 + $0x20] sm:$0xff] %v1305
      %1335 = vst [vmem:[%s255 + $0x40] sm:$0xff] %v1309
      %1336 = vst [vmem:[%s255 + $0x60] sm:$0xff] %v1313
      %1337 = vst [vmem:[%s255 + $0x80] sm:$0xff] %v1317
      %1338 = vst [vmem:[%s255 + $0xa0] sm:$0xff] %v1321
      %1339 = vst [vmem:[%s255 + $0xc0] sm:$0xff] %v1325
      %1340 = vst [vmem:[%s255 + $0xe0] sm:$0xff] %v1329
      %s1341 = scalar_lea.vmem %s255, 8
      %1342 = vst [vmem:[%s1341] sm:$0xff] %v1302
      %1343 = vst [vmem:[%s1341 + $0x20] sm:$0xff] %v1306
      %1344 = vst [vmem:[%s1341 + $0x40] sm:$0xff] %v1310
      %1345 = vst [vmem:[%s1341 + $0x60] sm:$0xff] %v1314
      %1346 = vst [vmem:[%s1341 + $0x80] sm:$0xff] %v1318
      %1347 = vst [vmem:[%s1341 + $0xa0] sm:$0xff] %v1322
      %1348 = vst [vmem:[%s1341 + $0xc0] sm:$0xff] %v1326
      %1349 = vst [vmem:[%s1341 + $0xe0] sm:$0xff] %v1330
      %s1350 = scalar_lea.vmem %s255, 16
      %1351 = vst [vmem:[%s1350] sm:$0xff] %v1303
      %1352 = vst [vmem:[%s1350 + $0x20] sm:$0xff] %v1307
      %1353 = vst [vmem:[%s1350 + $0x40] sm:$0xff] %v1311
      %1354 = vst [vmem:[%s1350 + $0x60] sm:$0xff] %v1315
      %1355 = vst [vmem:[%s1350 + $0x80] sm:$0xff] %v1319
      %1356 = vst [vmem:[%s1350 + $0xa0] sm:$0xff] %v1323
      %1357 = vst [vmem:[%s1350 + $0xc0] sm:$0xff] %v1327
      %1358 = vst [vmem:[%s1350 + $0xe0] sm:$0xff] %v1331
      %s1359 = scalar_lea.vmem %s255, 24
      %1360 = vst [vmem:[%s1359] sm:$0xff] %v1304
      %1361 = vst [vmem:[%s1359 + $0x20] sm:$0xff] %v1308
      %1362 = vst [vmem:[%s1359 + $0x40] sm:$0xff] %v1312
      %1363 = vst [vmem:[%s1359 + $0x60] sm:$0xff] %v1316
      %1364 = vst [vmem:[%s1359 + $0x80] sm:$0xff] %v1320
      %1365 = vst [vmem:[%s1359 + $0xa0] sm:$0xff] %v1324
      %1366 = vst [vmem:[%s1359 + $0xc0] sm:$0xff] %v1328
      %1367 = vst [vmem:[%s1359 + $0xe0] sm:$0xff] %v1332
      %s1368 = smul.u32 8, %s17
      %p1369 = scmp.lt.s32.totalorder %s1368, 15
      %s1370 = scalar_select %p1369, %s1368, 15
      %s1371 = smul.addr %s1370, 4
      %s1372 = smul.addr %s1371, 8
      %s1373 = scalar_lea.vmem %s6, %s1372
      // Predicated region
      $region45: #{final_patch_expand_x4.1} parent=43 // pred_check
        %p1374 = pneg %p166
      $region46: #{final_patch_expand_x4.1} parent=43 // pred_check_branch
        %1376 = sbr.rel (%p1374) target = $region48
      $region47: #{final_patch_expand_x4.1} parent=43 // pred_region
        %s1377 = smul.u32 8, %s17
      $region48: #{final_patch_expand_x4.1} parent=43 // pred_fallthru
        _
    $region44: #{final_patch_expand_x4.1} parent=5 // pred_fallthru
      _
    %p1378 = scmp.le.s32.totalorder 2, %s12
    // Predicated region
    $region49: #{final_patch_expand_x4.1} parent=5 // pred_check
      %p1379 = pneg %p1378
    $region50: #{final_patch_expand_x4.1} parent=5 // pred_check_branch
      %1381 = sbr.rel (%p1379) target = $region52
    $region51: #{final_patch_expand_x4.1} parent=5 // pred_region
      %s1382 = ssub.s32 %s12, 2
      // Predicated region
      $region53: #{final_patch_expand_x4.1} parent=51 // pred_check
        %p1383 = pneg %p172
      $region54: #{final_patch_expand_x4.1} parent=51 // pred_check_branch
        %1385 = sbr.rel (%p1383) target = $region56
      $region55: #{final_patch_expand_x4.1} parent=51 // pred_region
        %s1386 = smul.u32 8, %s18
        %p1387 = scmp.lt.s32.totalorder %s1386, 15
        %s1388 = scalar_select %p1387, %s1386, 15
        %s1389 = smul.addr %s1388, 4
        %s1390 = smul.addr %s1389, 8
        %s1391 = scalar_lea.vmem %s6, %s1390
      $region56: #{final_patch_expand_x4.1} parent=51 // pred_fallthru
        _
    $region52: #{final_patch_expand_x4.1} parent=5 // pred_fallthru
      _
  $region6: #{final_patch_expand_x4.1} parent=0 // loop_footer
    %s16 = sadd.s32 1, %s12
  $region7: #{final_patch_expand_x4.1} parent=0 // loop_footer_branch
    %11 = sbr.rel target = $region3
  $region8: #{final_patch_expand_x4.1} parent=0 // loop_exit
    _

</llo_original>
